<compile_context>
chip_gen: v6e
topology: v6e:2x2x1
jax: 0.10.0
libtpu: 0.0.40
codegen_flags: <defaults>
</compile_context>

<pallas_src>
import jax
import jax.numpy as jnp
from jax import lax
from jax.experimental import pallas as pl
from jax.experimental.pallas import tpu as pltpu


def _lstm_recurrence_kernel(seq_len_ref,            # SMEM (1,) int32  (scalar prefetch)
                            xproj_ref,               # VMEM (Ts, Bp, 4H) f32  (streamed chunk)
                            whh_ref,                 # VMEM (H, 4H) bf16
                            fcw_ref,                 # VMEM (1, H) f32
                            fcb_ref,                 # SMEM (1, 1) f32
                            out_ref,                 # VMEM (Bp, 1) f32
                            h_ref, c_ref):           # VMEM (Bp, H) f32 carried scratch
    """One sequence-chunk of the LSTM recurrence + fused fc/sigmoid head."""
    chunk = pl.program_id(0)
    n_chunks = pl.num_programs(0)
    Ts, Bp, _ = xproj_ref.shape
    H = whh_ref.shape[0]

    @pl.when(chunk == 0)
    def _init():
        h_ref[...] = jnp.zeros_like(h_ref)
        c_ref[...] = jnp.zeros_like(c_ref)

    seq_len = seq_len_ref[0]
    t0 = chunk * Ts
    # bf16 recurrent weights: 32 vregs instead of 64 — cheap to keep resident.
    whh = whh_ref[...]

    def step(t, carry):
        h, c = carry
        # Only the recurrent matmul sits on the serial dependency chain;
        # feed the MXU bf16 operands, accumulate in f32.
        gates = xproj_ref[t] + jnp.dot(h.astype(whh.dtype), whh,
                                       preferred_element_type=jnp.float32)
        i_g = jax.nn.sigmoid(gates[:, 0 * H:1 * H])
        f_g = jax.nn.sigmoid(gates[:, 1 * H:2 * H])
        g_g = jnp.tanh(gates[:, 2 * H:3 * H])
        o_g = jax.nn.sigmoid(gates[:, 3 * H:4 * H])
        c_new = f_g * c + i_g * g_g
        h_new = o_g * jnp.tanh(c_new)
        # Ragged / padded timesteps keep the previous state.
        keep = (t0 + t) < seq_len
        return jnp.where(keep, h_new, h), jnp.where(keep, c_new, c)

    # Full unroll only for small static chunks; rolled-ish for realistic S.
    unroll = True if Ts <= 16 else 4
    h_fin, c_fin = lax.fori_loop(0, Ts, step, (h_ref[...], c_ref[...]),
                                 unroll=unroll)
    h_ref[...] = h_fin
    c_ref[...] = c_fin

    @pl.when(chunk == n_chunks - 1)
    def _finish():
        # fc head as VPU multiply + XLU lane reduce (avoids an N=1 MXU matmul).
        logit = (jnp.sum(h_fin * fcw_ref[...], axis=-1, keepdims=True)
                 + fcb_ref[0, 0])
        out_ref[...] = jax.nn.sigmoid(logit)


def sentiment_lstm_forward(tokens, params, *, seq_chunk=32):
    """tokens: (B, S) int32 token ids.  Returns (B, 1) float32 probabilities."""
    emb = params["embedding"]          # (V, E)
    w_ih = params["w_ih"]              # (E, 4H)  (already transposed)
    w_hh = params["w_hh"]              # (H, 4H)
    b = params["b"]                    # (1, 4H)  = b_ih + b_hh
    fc_w = params["fc_w"]              # (H, 1)
    fc_b = params["fc_b"]              # (1, 1)

    B, S = tokens.shape
    H = w_hh.shape[0]

    # Pad batch to the 8-sublane f32 tile; padded rows are discarded below.
    B_pad = max(8, ((B + 7) // 8) * 8)
    tok = tokens if B_pad == B else jnp.pad(tokens, ((0, B_pad - B), (0, 0)))

    # Sequence-chunk size for the streamed xproj grid.
    Ts = min(seq_chunk, S)
    S_pad = ((S + Ts - 1) // Ts) * Ts
    n_chunks = S_pad // Ts

    # Glue (plain XLA): embedding gather + hoisted input projection, emitted
    # directly in time-major (S, B_pad, 4H) layout.
    x = jnp.take(emb, tok, axis=0)                                # (B_pad, S, E)
    xproj = jnp.einsum("bse,eg->sbg", x, w_ih,
                       preferred_element_type=jnp.float32) + b    # (S, B_pad, 4H)
    if S_pad != S:
        # Padded timesteps are masked out inside the kernel via seq_len.
        xproj = jnp.pad(xproj, ((0, S_pad - S), (0, 0), (0, 0)))

    # bf16 recurrent weights for the MXU (f32 accumulation in-kernel).
    # (xproj could also be cast to bf16 at scale; kept f32 here for accuracy.)
    whh_bf16 = w_hh.astype(jnp.bfloat16)
    fcw_row = fc_w.T.astype(jnp.float32)                          # (1, H)
    seq_len = jnp.array([S], jnp.int32)

    grid_spec = pltpu.PrefetchScalarGridSpec(
        num_scalar_prefetch=1,
        grid=(n_chunks,),
        in_specs=[
            # Streamed, double-buffered xproj chunk.
            pl.BlockSpec((Ts, B_pad, 4 * H), lambda s, sl: (s, 0, 0)),
            # Constant index maps -> weights fetched once, kept resident.
            pl.BlockSpec((H, 4 * H), lambda s, sl: (0, 0)),
            pl.BlockSpec((1, H), lambda s, sl: (0, 0)),
            # Scalar fc bias lives in SMEM.
            pl.BlockSpec(memory_space=pltpu.MemorySpace.SMEM),
        ],
        out_specs=pl.BlockSpec((B_pad, 1), lambda s, sl: (0, 0)),
        scratch_shapes=[
            pltpu.VMEM((B_pad, H), jnp.float32),   # carried h
            pltpu.VMEM((B_pad, H), jnp.float32),   # carried c
        ],
    )

    out = pl.pallas_call(
        _lstm_recurrence_kernel,
        out_shape=jax.ShapeDtypeStruct((B_pad, 1), jnp.float32),
        grid_spec=grid_spec,
        compiler_params=pltpu.CompilerParams(
            dimension_semantics=("arbitrary",),    # sequential recurrence
        ),
    )(seq_len, xproj, whh_bf16, fcw_row, fc_b)

    return out[:B]


def _reference_forward(tokens, params):
    """Pure-JAX f32 reference for correctness checking."""
    emb = params["embedding"]
    w_ih, w_hh, b = params["w_ih"], params["w_hh"], params["b"]
    fc_w, fc_b = params["fc_w"], params["fc_b"]
    B, S = tokens.shape
    H = w_hh.shape[0]
    x = jnp.take(emb, tokens, axis=0)  # (B, S, E)

    def step(carry, x_t):
        h, c = carry
        gates = x_t @ w_ih + h @ w_hh + b
        i = jax.nn.sigmoid(gates[:, 0 * H:1 * H])
        f = jax.nn.sigmoid(gates[:, 1 * H:2 * H])
        g = jnp.tanh(gates[:, 2 * H:3 * H])
        o = jax.nn.sigmoid(gates[:, 3 * H:4 * H])
        c = f * c + i * g
        h = o * jnp.tanh(c)
        return (h, c), None

    h0 = jnp.zeros((B, H), jnp.float32)
    c0 = jnp.zeros((B, H), jnp.float32)
    (h, _), _ = jax.lax.scan(step, (h0, c0), jnp.transpose(x, (1, 0, 2)))
    return jax.nn.sigmoid(h @ fc_w + fc_b)


def make_params(key, vocab_size, embed_size, hidden_size):
    ks = jax.random.split(key, 7)
    scale = 0.1
    return {
        "embedding": scale * jax.random.normal(
            ks[0], (vocab_size, embed_size), jnp.float32),
        # PyTorch stores W_ih as (4H, E); we keep its transpose (E, 4H).
        "w_ih": scale * jax.random.normal(
            ks[1], (embed_size, 4 * hidden_size), jnp.float32),
        "w_hh": scale * jax.random.normal(
            ks[2], (hidden_size, 4 * hidden_size), jnp.float32),
        # b = b_ih + b_hh (combined, broadcast over batch)
        "b": scale * jax.random.normal(
            ks[3], (1, 4 * hidden_size), jnp.float32),
        "fc_w": scale * jax.random.normal(
            ks[4], (hidden_size, 1), jnp.float32),
        "fc_b": scale * jax.random.normal(ks[5], (1, 1), jnp.float32),
    }


if __name__ == "__main__":
    VOCAB = 50
    EMBED = 64
    HIDDEN = 128
    B, S = 2, 8

    key = jax.random.PRNGKey(0)
    pkey, tkey = jax.random.split(key)
    params = make_params(pkey, VOCAB, EMBED, HIDDEN)
    tokens = jax.random.randint(tkey, (B, S), 0, VOCAB, dtype=jnp.int32)

    out = sentiment_lstm_forward(tokens, params)
    out = jax.block_until_ready(out)

    ref = jax.block_until_ready(_reference_forward(tokens, params))
    assert out.shape == (B, 1)
    # bf16 recurrent matmul (f32 accumulation) -> loosened tolerance vs f32 ref.
    assert jnp.allclose(out, ref, atol=1e-2, rtol=1e-2), (out, ref)

    print("KERNEL_OK")
</pallas_src>

<mosaic_0001>
module attributes {stable_mosaic.version = 11 : i64} {
  func.func @_lstm_recurrence_kernel(%arg0: i32, %arg1: memref<1xi32, #tpu.memory_space<smem>>, %arg2: memref<8x8x512xf32, #tpu.memory_space<vmem>>, %arg3: memref<128x512xbf16, #tpu.memory_space<vmem>>, %arg4: memref<1x128xf32, #tpu.memory_space<vmem>>, %arg5: memref<1x1xf32, #tpu.memory_space<smem>>, %arg6: memref<8x1xf32, #tpu.memory_space<vmem>>, %arg7: memref<8x128xf32, #tpu.memory_space<vmem>>, %arg8: memref<8x128xf32, #tpu.memory_space<vmem>>) attributes {dimension_semantics = [#tpu.dimension_semantics<arbitrary>], iteration_bounds = array<i64: 1>, scalar_prefetch = 1 : i64, scratch_operands = 2 : i64, tpu.core_type = #tpu.core_type<tc>, window_params = [{transform_indices = @transform_0, window_bounds = array<i64: 8, 8, 512>}, {pipeline_mode = #tpu.pipeline_mode<synchronous>, transform_indices = @transform_1, window_bounds = array<i64: 128, 512>}, {pipeline_mode = #tpu.pipeline_mode<synchronous>, transform_indices = @transform_2, window_bounds = array<i64: 1, 128>}, {transform_indices = @transform_3, window_bounds = array<i64: 1, 1>}, {pipeline_mode = #tpu.pipeline_mode<synchronous>, transform_indices = @transform_4, window_bounds = array<i64: 8, 1>}]} {
    %c0_i32 = arith.constant 0 : i32
    %0 = arith.cmpi eq, %arg0, %c0_i32 : i32
    %1 = arith.extui %0 : i1 to i32
    %c0_i32_0 = arith.constant 0 : i32
    %2 = arith.cmpi ne, %1, %c0_i32_0 : i32
    scf.if %2 {
      %cst_62 = arith.constant 0.000000e+00 : f32
      %293 = vector.broadcast %cst_62 : f32 to vector<8x128xf32>
      %c0_63 = arith.constant 0 : index
      %c0_64 = arith.constant 0 : index
      %294 = vector.load %arg7[%c0_63, %c0_64] : memref<8x128xf32, #tpu.memory_space<vmem>>, vector<8x128xf32>
      tpu.vector_store %arg7[%c0_63, %c0_64], %293 {strides = array<i32>} : memref<8x128xf32, #tpu.memory_space<vmem>>, vector<8x128xf32>,
      %cst_65 = arith.constant 0.000000e+00 : f32
      %295 = vector.broadcast %cst_65 : f32 to vector<8x128xf32>
      %c0_66 = arith.constant 0 : index
      %c0_67 = arith.constant 0 : index
      %296 = vector.load %arg8[%c0_66, %c0_67] : memref<8x128xf32, #tpu.memory_space<vmem>>, vector<8x128xf32>
      tpu.vector_store %arg8[%c0_66, %c0_67], %295 {strides = array<i32>} : memref<8x128xf32, #tpu.memory_space<vmem>>, vector<8x128xf32>,
    } else {
    }
    %c0 = arith.constant 0 : index
    %3 = memref.load %arg1[%c0] : memref<1xi32, #tpu.memory_space<smem>>
    %c8_i32 = arith.constant 8 : i32
    %4 = arith.muli %arg0, %c8_i32 : i32
    %c0_1 = arith.constant 0 : index
    %c0_2 = arith.constant 0 : index
    %5 = vector.load %arg3[%c0_1, %c0_2] : memref<128x512xbf16, #tpu.memory_space<vmem>>, vector<128x512xbf16>
    %c0_3 = arith.constant 0 : index
    %c0_4 = arith.constant 0 : index
    %6 = vector.load %arg7[%c0_3, %c0_4] : memref<8x128xf32, #tpu.memory_space<vmem>>, vector<8x128xf32>
    %c0_5 = arith.constant 0 : index
    %c0_6 = arith.constant 0 : index
    %7 = vector.load %arg8[%c0_5, %c0_6] : memref<8x128xf32, #tpu.memory_space<vmem>>, vector<8x128xf32>
    %c0_i32_7 = arith.constant 0 : i32
    %8 = arith.index_cast %c0_i32_7 : i32 to index
    %c0_8 = arith.constant 0 : index
    %c0_9 = arith.constant 0 : index
    %9 = vector.load %arg2[%8, %c0_8, %c0_9] : memref<8x8x512xf32, #tpu.memory_space<vmem>>, vector<1x8x512xf32>
    %10 = vector.shape_cast %9 : vector<1x8x512xf32> to vector<8x512xf32>
    %11 = arith.truncf %6 : vector<8x128xf32> to vector<8x128xbf16>
    %cst = arith.constant dense<0.000000e+00> : vector<8x512xf32>
    %12 = tpu.matmul %11, %5, %cst {dimension_numbers = #tpu.dot_dimension_numbers<[1], [0], [0], [1], [0, 0, 1, 1], [], []>} : vector<8x128xbf16>, vector<128x512xbf16>, vector<8x512xf32> -> vector<8x512xf32>
    %13 = arith.addf %10, %12 : vector<8x512xf32>
    %14 = vector.extract_strided_slice %13 {offsets = [0, 0], sizes = [8, 128], strides = [1, 1]} : vector<8x512xf32> to vector<8x128xf32>
    %15 = arith.negf %14 : vector<8x128xf32>
    %16 = math.exp %15 : vector<8x128xf32>
    %cst_10 = arith.constant 1.000000e+00 : f32
    %17 = vector.broadcast %cst_10 : f32 to vector<8x128xf32>
    %18 = arith.addf %17, %16 : vector<8x128xf32>
    %19 = arith.divf %17, %18 : vector<8x128xf32>
    %20 = vector.extract_strided_slice %13 {offsets = [0, 128], sizes = [8, 128], strides = [1, 1]} : vector<8x512xf32> to vector<8x128xf32>
    %21 = arith.negf %20 : vector<8x128xf32>
    %22 = math.exp %21 : vector<8x128xf32>
    %cst_11 = arith.constant 1.000000e+00 : f32
    %23 = vector.broadcast %cst_11 : f32 to vector<8x128xf32>
    %24 = arith.addf %23, %22 : vector<8x128xf32>
    %25 = arith.divf %23, %24 : vector<8x128xf32>
    %26 = vector.extract_strided_slice %13 {offsets = [0, 256], sizes = [8, 128], strides = [1, 1]} : vector<8x512xf32> to vector<8x128xf32>
    %27 = math.tanh %26 : vector<8x128xf32>
    %28 = vector.extract_strided_slice %13 {offsets = [0, 384], sizes = [8, 128], strides = [1, 1]} : vector<8x512xf32> to vector<8x128xf32>
    %29 = arith.negf %28 : vector<8x128xf32>
    %30 = math.exp %29 : vector<8x128xf32>
    %cst_12 = arith.constant 1.000000e+00 : f32
    %31 = vector.broadcast %cst_12 : f32 to vector<8x128xf32>
    %32 = arith.addf %31, %30 : vector<8x128xf32>
    %33 = arith.divf %31, %32 : vector<8x128xf32>
    %34 = arith.mulf %25, %7 : vector<8x128xf32>
    %35 = arith.mulf %19, %27 : vector<8x128xf32>
    %36 = arith.addf %34, %35 : vector<8x128xf32>
    %37 = math.tanh %36 : vector<8x128xf32>
    %38 = arith.mulf %33, %37 : vector<8x128xf32>
    %39 = arith.addi %4, %c0_i32_7 : i32
    %40 = arith.cmpi slt, %39, %3 : i32
    %41 = arith.select %40, %38, %6 : vector<8x128xf32>
    %42 = arith.select %40, %36, %7 : vector<8x128xf32>
    %c1_i32 = arith.constant 1 : i32
    %43 = arith.index_cast %c1_i32 : i32 to index
    %c0_13 = arith.constant 0 : index
    %c0_14 = arith.constant 0 : index
    %44 = vector.load %arg2[%43, %c0_13, %c0_14] : memref<8x8x512xf32, #tpu.memory_space<vmem>>, vector<1x8x512xf32>
    %45 = vector.shape_cast %44 : vector<1x8x512xf32> to vector<8x512xf32>
    %46 = arith.truncf %41 : vector<8x128xf32> to vector<8x128xbf16>
    %cst_15 = arith.constant dense<0.000000e+00> : vector<8x512xf32>
    %47 = tpu.matmul %46, %5, %cst_15 {dimension_numbers = #tpu.dot_dimension_numbers<[1], [0], [0], [1], [0, 0, 1, 1], [], []>} : vector<8x128xbf16>, vector<128x512xbf16>, vector<8x512xf32> -> vector<8x512xf32>
    %48 = arith.addf %45, %47 : vector<8x512xf32>
    %49 = vector.extract_strided_slice %48 {offsets = [0, 0], sizes = [8, 128], strides = [1, 1]} : vector<8x512xf32> to vector<8x128xf32>
    %50 = arith.negf %49 : vector<8x128xf32>
    %51 = math.exp %50 : vector<8x128xf32>
    %cst_16 = arith.constant 1.000000e+00 : f32
    %52 = vector.broadcast %cst_16 : f32 to vector<8x128xf32>
    %53 = arith.addf %52, %51 : vector<8x128xf32>
    %54 = arith.divf %52, %53 : vector<8x128xf32>
    %55 = vector.extract_strided_slice %48 {offsets = [0, 128], sizes = [8, 128], strides = [1, 1]} : vector<8x512xf32> to vector<8x128xf32>
    %56 = arith.negf %55 : vector<8x128xf32>
    %57 = math.exp %56 : vector<8x128xf32>
    %cst_17 = arith.constant 1.000000e+00 : f32
    %58 = vector.broadcast %cst_17 : f32 to vector<8x128xf32>
    %59 = arith.addf %58, %57 : vector<8x128xf32>
    %60 = arith.divf %58, %59 : vector<8x128xf32>
    %61 = vector.extract_strided_slice %48 {offsets = [0, 256], sizes = [8, 128], strides = [1, 1]} : vector<8x512xf32> to vector<8x128xf32>
    %62 = math.tanh %61 : vector<8x128xf32>
    %63 = vector.extract_strided_slice %48 {offsets = [0, 384], sizes = [8, 128], strides = [1, 1]} : vector<8x512xf32> to vector<8x128xf32>
    %64 = arith.negf %63 : vector<8x128xf32>
    %65 = math.exp %64 : vector<8x128xf32>
    %cst_18 = arith.constant 1.000000e+00 : f32
    %66 = vector.broadcast %cst_18 : f32 to vector<8x128xf32>
    %67 = arith.addf %66, %65 : vector<8x128xf32>
    %68 = arith.divf %66, %67 : vector<8x128xf32>
    %69 = arith.mulf %60, %42 : vector<8x128xf32>
    %70 = arith.mulf %54, %62 : vector<8x128xf32>
    %71 = arith.addf %69, %70 : vector<8x128xf32>
    %72 = math.tanh %71 : vector<8x128xf32>
    %73 = arith.mulf %68, %72 : vector<8x128xf32>
    %74 = arith.addi %4, %c1_i32 : i32
    %75 = arith.cmpi slt, %74, %3 : i32
    %76 = arith.select %75, %73, %41 : vector<8x128xf32>
    %77 = arith.select %75, %71, %42 : vector<8x128xf32>
    %c2_i32 = arith.constant 2 : i32
    %78 = arith.index_cast %c2_i32 : i32 to index
    %c0_19 = arith.constant 0 : index
    %c0_20 = arith.constant 0 : index
    %79 = vector.load %arg2[%78, %c0_19, %c0_20] : memref<8x8x512xf32, #tpu.memory_space<vmem>>, vector<1x8x512xf32>
    %80 = vector.shape_cast %79 : vector<1x8x512xf32> to vector<8x512xf32>
    %81 = arith.truncf %76 : vector<8x128xf32> to vector<8x128xbf16>
    %cst_21 = arith.constant dense<0.000000e+00> : vector<8x512xf32>
    %82 = tpu.matmul %81, %5, %cst_21 {dimension_numbers = #tpu.dot_dimension_numbers<[1], [0], [0], [1], [0, 0, 1, 1], [], []>} : vector<8x128xbf16>, vector<128x512xbf16>, vector<8x512xf32> -> vector<8x512xf32>
    %83 = arith.addf %80, %82 : vector<8x512xf32>
    %84 = vector.extract_strided_slice %83 {offsets = [0, 0], sizes = [8, 128], strides = [1, 1]} : vector<8x512xf32> to vector<8x128xf32>
    %85 = arith.negf %84 : vector<8x128xf32>
    %86 = math.exp %85 : vector<8x128xf32>
    %cst_22 = arith.constant 1.000000e+00 : f32
    %87 = vector.broadcast %cst_22 : f32 to vector<8x128xf32>
    %88 = arith.addf %87, %86 : vector<8x128xf32>
    %89 = arith.divf %87, %88 : vector<8x128xf32>
    %90 = vector.extract_strided_slice %83 {offsets = [0, 128], sizes = [8, 128], strides = [1, 1]} : vector<8x512xf32> to vector<8x128xf32>
    %91 = arith.negf %90 : vector<8x128xf32>
    %92 = math.exp %91 : vector<8x128xf32>
    %cst_23 = arith.constant 1.000000e+00 : f32
    %93 = vector.broadcast %cst_23 : f32 to vector<8x128xf32>
    %94 = arith.addf %93, %92 : vector<8x128xf32>
    %95 = arith.divf %93, %94 : vector<8x128xf32>
    %96 = vector.extract_strided_slice %83 {offsets = [0, 256], sizes = [8, 128], strides = [1, 1]} : vector<8x512xf32> to vector<8x128xf32>
    %97 = math.tanh %96 : vector<8x128xf32>
    %98 = vector.extract_strided_slice %83 {offsets = [0, 384], sizes = [8, 128], strides = [1, 1]} : vector<8x512xf32> to vector<8x128xf32>
    %99 = arith.negf %98 : vector<8x128xf32>
    %100 = math.exp %99 : vector<8x128xf32>
    %cst_24 = arith.constant 1.000000e+00 : f32
    %101 = vector.broadcast %cst_24 : f32 to vector<8x128xf32>
    %102 = arith.addf %101, %100 : vector<8x128xf32>
    %103 = arith.divf %101, %102 : vector<8x128xf32>
    %104 = arith.mulf %95, %77 : vector<8x128xf32>
    %105 = arith.mulf %89, %97 : vector<8x128xf32>
    %106 = arith.addf %104, %105 : vector<8x128xf32>
    %107 = math.tanh %106 : vector<8x128xf32>
    %108 = arith.mulf %103, %107 : vector<8x128xf32>
    %109 = arith.addi %4, %c2_i32 : i32
    %110 = arith.cmpi slt, %109, %3 : i32
    %111 = arith.select %110, %108, %76 : vector<8x128xf32>
    %112 = arith.select %110, %106, %77 : vector<8x128xf32>
    %c3_i32 = arith.constant 3 : i32
    %113 = arith.index_cast %c3_i32 : i32 to index
    %c0_25 = arith.constant 0 : index
    %c0_26 = arith.constant 0 : index
    %114 = vector.load %arg2[%113, %c0_25, %c0_26] : memref<8x8x512xf32, #tpu.memory_space<vmem>>, vector<1x8x512xf32>
    %115 = vector.shape_cast %114 : vector<1x8x512xf32> to vector<8x512xf32>
    %116 = arith.truncf %111 : vector<8x128xf32> to vector<8x128xbf16>
    %cst_27 = arith.constant dense<0.000000e+00> : vector<8x512xf32>
    %117 = tpu.matmul %116, %5, %cst_27 {dimension_numbers = #tpu.dot_dimension_numbers<[1], [0], [0], [1], [0, 0, 1, 1], [], []>} : vector<8x128xbf16>, vector<128x512xbf16>, vector<8x512xf32> -> vector<8x512xf32>
    %118 = arith.addf %115, %117 : vector<8x512xf32>
    %119 = vector.extract_strided_slice %118 {offsets = [0, 0], sizes = [8, 128], strides = [1, 1]} : vector<8x512xf32> to vector<8x128xf32>
    %120 = arith.negf %119 : vector<8x128xf32>
    %121 = math.exp %120 : vector<8x128xf32>
    %cst_28 = arith.constant 1.000000e+00 : f32
    %122 = vector.broadcast %cst_28 : f32 to vector<8x128xf32>
    %123 = arith.addf %122, %121 : vector<8x128xf32>
    %124 = arith.divf %122, %123 : vector<8x128xf32>
    %125 = vector.extract_strided_slice %118 {offsets = [0, 128], sizes = [8, 128], strides = [1, 1]} : vector<8x512xf32> to vector<8x128xf32>
    %126 = arith.negf %125 : vector<8x128xf32>
    %127 = math.exp %126 : vector<8x128xf32>
    %cst_29 = arith.constant 1.000000e+00 : f32
    %128 = vector.broadcast %cst_29 : f32 to vector<8x128xf32>
    %129 = arith.addf %128, %127 : vector<8x128xf32>
    %130 = arith.divf %128, %129 : vector<8x128xf32>
    %131 = vector.extract_strided_slice %118 {offsets = [0, 256], sizes = [8, 128], strides = [1, 1]} : vector<8x512xf32> to vector<8x128xf32>
    %132 = math.tanh %131 : vector<8x128xf32>
    %133 = vector.extract_strided_slice %118 {offsets = [0, 384], sizes = [8, 128], strides = [1, 1]} : vector<8x512xf32> to vector<8x128xf32>
    %134 = arith.negf %133 : vector<8x128xf32>
    %135 = math.exp %134 : vector<8x128xf32>
    %cst_30 = arith.constant 1.000000e+00 : f32
    %136 = vector.broadcast %cst_30 : f32 to vector<8x128xf32>
    %137 = arith.addf %136, %135 : vector<8x128xf32>
    %138 = arith.divf %136, %137 : vector<8x128xf32>
    %139 = arith.mulf %130, %112 : vector<8x128xf32>
    %140 = arith.mulf %124, %132 : vector<8x128xf32>
    %141 = arith.addf %139, %140 : vector<8x128xf32>
    %142 = math.tanh %141 : vector<8x128xf32>
    %143 = arith.mulf %138, %142 : vector<8x128xf32>
    %144 = arith.addi %4, %c3_i32 : i32
    %145 = arith.cmpi slt, %144, %3 : i32
    %146 = arith.select %145, %143, %111 : vector<8x128xf32>
    %147 = arith.select %145, %141, %112 : vector<8x128xf32>
    %c4_i32 = arith.constant 4 : i32
    %148 = arith.index_cast %c4_i32 : i32 to index
    %c0_31 = arith.constant 0 : index
    %c0_32 = arith.constant 0 : index
    %149 = vector.load %arg2[%148, %c0_31, %c0_32] : memref<8x8x512xf32, #tpu.memory_space<vmem>>, vector<1x8x512xf32>
    %150 = vector.shape_cast %149 : vector<1x8x512xf32> to vector<8x512xf32>
    %151 = arith.truncf %146 : vector<8x128xf32> to vector<8x128xbf16>
    %cst_33 = arith.constant dense<0.000000e+00> : vector<8x512xf32>
    %152 = tpu.matmul %151, %5, %cst_33 {dimension_numbers = #tpu.dot_dimension_numbers<[1], [0], [0], [1], [0, 0, 1, 1], [], []>} : vector<8x128xbf16>, vector<128x512xbf16>, vector<8x512xf32> -> vector<8x512xf32>
    %153 = arith.addf %150, %152 : vector<8x512xf32>
    %154 = vector.extract_strided_slice %153 {offsets = [0, 0], sizes = [8, 128], strides = [1, 1]} : vector<8x512xf32> to vector<8x128xf32>
    %155 = arith.negf %154 : vector<8x128xf32>
    %156 = math.exp %155 : vector<8x128xf32>
    %cst_34 = arith.constant 1.000000e+00 : f32
    %157 = vector.broadcast %cst_34 : f32 to vector<8x128xf32>
    %158 = arith.addf %157, %156 : vector<8x128xf32>
    %159 = arith.divf %157, %158 : vector<8x128xf32>
    %160 = vector.extract_strided_slice %153 {offsets = [0, 128], sizes = [8, 128], strides = [1, 1]} : vector<8x512xf32> to vector<8x128xf32>
    %161 = arith.negf %160 : vector<8x128xf32>
    %162 = math.exp %161 : vector<8x128xf32>
    %cst_35 = arith.constant 1.000000e+00 : f32
    %163 = vector.broadcast %cst_35 : f32 to vector<8x128xf32>
    %164 = arith.addf %163, %162 : vector<8x128xf32>
    %165 = arith.divf %163, %164 : vector<8x128xf32>
    %166 = vector.extract_strided_slice %153 {offsets = [0, 256], sizes = [8, 128], strides = [1, 1]} : vector<8x512xf32> to vector<8x128xf32>
    %167 = math.tanh %166 : vector<8x128xf32>
    %168 = vector.extract_strided_slice %153 {offsets = [0, 384], sizes = [8, 128], strides = [1, 1]} : vector<8x512xf32> to vector<8x128xf32>
    %169 = arith.negf %168 : vector<8x128xf32>
    %170 = math.exp %169 : vector<8x128xf32>
    %cst_36 = arith.constant 1.000000e+00 : f32
    %171 = vector.broadcast %cst_36 : f32 to vector<8x128xf32>
    %172 = arith.addf %171, %170 : vector<8x128xf32>
    %173 = arith.divf %171, %172 : vector<8x128xf32>
    %174 = arith.mulf %165, %147 : vector<8x128xf32>
    %175 = arith.mulf %159, %167 : vector<8x128xf32>
    %176 = arith.addf %174, %175 : vector<8x128xf32>
    %177 = math.tanh %176 : vector<8x128xf32>
    %178 = arith.mulf %173, %177 : vector<8x128xf32>
    %179 = arith.addi %4, %c4_i32 : i32
    %180 = arith.cmpi slt, %179, %3 : i32
    %181 = arith.select %180, %178, %146 : vector<8x128xf32>
    %182 = arith.select %180, %176, %147 : vector<8x128xf32>
    %c5_i32 = arith.constant 5 : i32
    %183 = arith.index_cast %c5_i32 : i32 to index
    %c0_37 = arith.constant 0 : index
    %c0_38 = arith.constant 0 : index
    %184 = vector.load %arg2[%183, %c0_37, %c0_38] : memref<8x8x512xf32, #tpu.memory_space<vmem>>, vector<1x8x512xf32>
    %185 = vector.shape_cast %184 : vector<1x8x512xf32> to vector<8x512xf32>
    %186 = arith.truncf %181 : vector<8x128xf32> to vector<8x128xbf16>
    %cst_39 = arith.constant dense<0.000000e+00> : vector<8x512xf32>
    %187 = tpu.matmul %186, %5, %cst_39 {dimension_numbers = #tpu.dot_dimension_numbers<[1], [0], [0], [1], [0, 0, 1, 1], [], []>} : vector<8x128xbf16>, vector<128x512xbf16>, vector<8x512xf32> -> vector<8x512xf32>
    %188 = arith.addf %185, %187 : vector<8x512xf32>
    %189 = vector.extract_strided_slice %188 {offsets = [0, 0], sizes = [8, 128], strides = [1, 1]} : vector<8x512xf32> to vector<8x128xf32>
    %190 = arith.negf %189 : vector<8x128xf32>
    %191 = math.exp %190 : vector<8x128xf32>
    %cst_40 = arith.constant 1.000000e+00 : f32
    %192 = vector.broadcast %cst_40 : f32 to vector<8x128xf32>
    %193 = arith.addf %192, %191 : vector<8x128xf32>
    %194 = arith.divf %192, %193 : vector<8x128xf32>
    %195 = vector.extract_strided_slice %188 {offsets = [0, 128], sizes = [8, 128], strides = [1, 1]} : vector<8x512xf32> to vector<8x128xf32>
    %196 = arith.negf %195 : vector<8x128xf32>
    %197 = math.exp %196 : vector<8x128xf32>
    %cst_41 = arith.constant 1.000000e+00 : f32
    %198 = vector.broadcast %cst_41 : f32 to vector<8x128xf32>
    %199 = arith.addf %198, %197 : vector<8x128xf32>
    %200 = arith.divf %198, %199 : vector<8x128xf32>
    %201 = vector.extract_strided_slice %188 {offsets = [0, 256], sizes = [8, 128], strides = [1, 1]} : vector<8x512xf32> to vector<8x128xf32>
    %202 = math.tanh %201 : vector<8x128xf32>
    %203 = vector.extract_strided_slice %188 {offsets = [0, 384], sizes = [8, 128], strides = [1, 1]} : vector<8x512xf32> to vector<8x128xf32>
    %204 = arith.negf %203 : vector<8x128xf32>
    %205 = math.exp %204 : vector<8x128xf32>
    %cst_42 = arith.constant 1.000000e+00 : f32
    %206 = vector.broadcast %cst_42 : f32 to vector<8x128xf32>
    %207 = arith.addf %206, %205 : vector<8x128xf32>
    %208 = arith.divf %206, %207 : vector<8x128xf32>
    %209 = arith.mulf %200, %182 : vector<8x128xf32>
    %210 = arith.mulf %194, %202 : vector<8x128xf32>
    %211 = arith.addf %209, %210 : vector<8x128xf32>
    %212 = math.tanh %211 : vector<8x128xf32>
    %213 = arith.mulf %208, %212 : vector<8x128xf32>
    %214 = arith.addi %4, %c5_i32 : i32
    %215 = arith.cmpi slt, %214, %3 : i32
    %216 = arith.select %215, %213, %181 : vector<8x128xf32>
    %217 = arith.select %215, %211, %182 : vector<8x128xf32>
    %c6_i32 = arith.constant 6 : i32
    %218 = arith.index_cast %c6_i32 : i32 to index
    %c0_43 = arith.constant 0 : index
    %c0_44 = arith.constant 0 : index
    %219 = vector.load %arg2[%218, %c0_43, %c0_44] : memref<8x8x512xf32, #tpu.memory_space<vmem>>, vector<1x8x512xf32>
    %220 = vector.shape_cast %219 : vector<1x8x512xf32> to vector<8x512xf32>
    %221 = arith.truncf %216 : vector<8x128xf32> to vector<8x128xbf16>
    %cst_45 = arith.constant dense<0.000000e+00> : vector<8x512xf32>
    %222 = tpu.matmul %221, %5, %cst_45 {dimension_numbers = #tpu.dot_dimension_numbers<[1], [0], [0], [1], [0, 0, 1, 1], [], []>} : vector<8x128xbf16>, vector<128x512xbf16>, vector<8x512xf32> -> vector<8x512xf32>
    %223 = arith.addf %220, %222 : vector<8x512xf32>
    %224 = vector.extract_strided_slice %223 {offsets = [0, 0], sizes = [8, 128], strides = [1, 1]} : vector<8x512xf32> to vector<8x128xf32>
    %225 = arith.negf %224 : vector<8x128xf32>
    %226 = math.exp %225 : vector<8x128xf32>
    %cst_46 = arith.constant 1.000000e+00 : f32
    %227 = vector.broadcast %cst_46 : f32 to vector<8x128xf32>
    %228 = arith.addf %227, %226 : vector<8x128xf32>
    %229 = arith.divf %227, %228 : vector<8x128xf32>
    %230 = vector.extract_strided_slice %223 {offsets = [0, 128], sizes = [8, 128], strides = [1, 1]} : vector<8x512xf32> to vector<8x128xf32>
    %231 = arith.negf %230 : vector<8x128xf32>
    %232 = math.exp %231 : vector<8x128xf32>
    %cst_47 = arith.constant 1.000000e+00 : f32
    %233 = vector.broadcast %cst_47 : f32 to vector<8x128xf32>
    %234 = arith.addf %233, %232 : vector<8x128xf32>
    %235 = arith.divf %233, %234 : vector<8x128xf32>
    %236 = vector.extract_strided_slice %223 {offsets = [0, 256], sizes = [8, 128], strides = [1, 1]} : vector<8x512xf32> to vector<8x128xf32>
    %237 = math.tanh %236 : vector<8x128xf32>
    %238 = vector.extract_strided_slice %223 {offsets = [0, 384], sizes = [8, 128], strides = [1, 1]} : vector<8x512xf32> to vector<8x128xf32>
    %239 = arith.negf %238 : vector<8x128xf32>
    %240 = math.exp %239 : vector<8x128xf32>
    %cst_48 = arith.constant 1.000000e+00 : f32
    %241 = vector.broadcast %cst_48 : f32 to vector<8x128xf32>
    %242 = arith.addf %241, %240 : vector<8x128xf32>
    %243 = arith.divf %241, %242 : vector<8x128xf32>
    %244 = arith.mulf %235, %217 : vector<8x128xf32>
    %245 = arith.mulf %229, %237 : vector<8x128xf32>
    %246 = arith.addf %244, %245 : vector<8x128xf32>
    %247 = math.tanh %246 : vector<8x128xf32>
    %248 = arith.mulf %243, %247 : vector<8x128xf32>
    %249 = arith.addi %4, %c6_i32 : i32
    %250 = arith.cmpi slt, %249, %3 : i32
    %251 = arith.select %250, %248, %216 : vector<8x128xf32>
    %252 = arith.select %250, %246, %217 : vector<8x128xf32>
    %c7_i32 = arith.constant 7 : i32
    %253 = arith.index_cast %c7_i32 : i32 to index
    %c0_49 = arith.constant 0 : index
    %c0_50 = arith.constant 0 : index
    %254 = vector.load %arg2[%253, %c0_49, %c0_50] : memref<8x8x512xf32, #tpu.memory_space<vmem>>, vector<1x8x512xf32>
    %255 = vector.shape_cast %254 : vector<1x8x512xf32> to vector<8x512xf32>
    %256 = arith.truncf %251 : vector<8x128xf32> to vector<8x128xbf16>
    %cst_51 = arith.constant dense<0.000000e+00> : vector<8x512xf32>
    %257 = tpu.matmul %256, %5, %cst_51 {dimension_numbers = #tpu.dot_dimension_numbers<[1], [0], [0], [1], [0, 0, 1, 1], [], []>} : vector<8x128xbf16>, vector<128x512xbf16>, vector<8x512xf32> -> vector<8x512xf32>
    %258 = arith.addf %255, %257 : vector<8x512xf32>
    %259 = vector.extract_strided_slice %258 {offsets = [0, 0], sizes = [8, 128], strides = [1, 1]} : vector<8x512xf32> to vector<8x128xf32>
    %260 = arith.negf %259 : vector<8x128xf32>
    %261 = math.exp %260 : vector<8x128xf32>
    %cst_52 = arith.constant 1.000000e+00 : f32
    %262 = vector.broadcast %cst_52 : f32 to vector<8x128xf32>
    %263 = arith.addf %262, %261 : vector<8x128xf32>
    %264 = arith.divf %262, %263 : vector<8x128xf32>
    %265 = vector.extract_strided_slice %258 {offsets = [0, 128], sizes = [8, 128], strides = [1, 1]} : vector<8x512xf32> to vector<8x128xf32>
    %266 = arith.negf %265 : vector<8x128xf32>
    %267 = math.exp %266 : vector<8x128xf32>
    %cst_53 = arith.constant 1.000000e+00 : f32
    %268 = vector.broadcast %cst_53 : f32 to vector<8x128xf32>
    %269 = arith.addf %268, %267 : vector<8x128xf32>
    %270 = arith.divf %268, %269 : vector<8x128xf32>
    %271 = vector.extract_strided_slice %258 {offsets = [0, 256], sizes = [8, 128], strides = [1, 1]} : vector<8x512xf32> to vector<8x128xf32>
    %272 = math.tanh %271 : vector<8x128xf32>
    %273 = vector.extract_strided_slice %258 {offsets = [0, 384], sizes = [8, 128], strides = [1, 1]} : vector<8x512xf32> to vector<8x128xf32>
    %274 = arith.negf %273 : vector<8x128xf32>
    %275 = math.exp %274 : vector<8x128xf32>
    %cst_54 = arith.constant 1.000000e+00 : f32
    %276 = vector.broadcast %cst_54 : f32 to vector<8x128xf32>
    %277 = arith.addf %276, %275 : vector<8x128xf32>
    %278 = arith.divf %276, %277 : vector<8x128xf32>
    %279 = arith.mulf %270, %252 : vector<8x128xf32>
    %280 = arith.mulf %264, %272 : vector<8x128xf32>
    %281 = arith.addf %279, %280 : vector<8x128xf32>
    %282 = math.tanh %281 : vector<8x128xf32>
    %283 = arith.mulf %278, %282 : vector<8x128xf32>
    %284 = arith.addi %4, %c7_i32 : i32
    %285 = arith.cmpi slt, %284, %3 : i32
    %286 = arith.select %285, %283, %251 : vector<8x128xf32>
    %287 = arith.select %285, %281, %252 : vector<8x128xf32>
    %c8_i32_55 = arith.constant 8 : i32
    %c0_56 = arith.constant 0 : index
    %c0_57 = arith.constant 0 : index
    %288 = vector.load %arg7[%c0_56, %c0_57] : memref<8x128xf32, #tpu.memory_space<vmem>>, vector<8x128xf32>
    tpu.vector_store %arg7[%c0_56, %c0_57], %286 {strides = array<i32>} : memref<8x128xf32, #tpu.memory_space<vmem>>, vector<8x128xf32>,
    %c0_58 = arith.constant 0 : index
    %c0_59 = arith.constant 0 : index
    %289 = vector.load %arg8[%c0_58, %c0_59] : memref<8x128xf32, #tpu.memory_space<vmem>>, vector<8x128xf32>
    tpu.vector_store %arg8[%c0_58, %c0_59], %287 {strides = array<i32>} : memref<8x128xf32, #tpu.memory_space<vmem>>, vector<8x128xf32>,
    %c0_i32_60 = arith.constant 0 : i32
    %290 = arith.cmpi eq, %arg0, %c0_i32_60 : i32
    %291 = arith.extui %290 : i1 to i32
    %c0_i32_61 = arith.constant 0 : i32
    %292 = arith.cmpi ne, %291, %c0_i32_61 : i32
    scf.if %292 {
      %c0_62 = arith.constant 0 : index
      %c0_63 = arith.constant 0 : index
      %293 = vector.load %arg4[%c0_62, %c0_63] : memref<1x128xf32, #tpu.memory_space<vmem>>, vector<1x128xf32>
      %294 = vector.broadcast %293 : vector<1x128xf32> to vector<8x128xf32>
      %295 = arith.mulf %286, %294 : vector<8x128xf32>
      %cst_64 = arith.constant dense<0.000000e+00> : vector<8xf32>
      %296 = vector.multi_reduction <add>, %295, %cst_64 [1] : vector<8x128xf32> to vector<8xf32>
      %297 = vector.shape_cast %296 : vector<8xf32> to vector<8x1xf32>
      %c0_65 = arith.constant 0 : index
      %c0_66 = arith.constant 0 : index
      %298 = memref.load %arg5[%c0_65, %c0_66] : memref<1x1xf32, #tpu.memory_space<smem>>
      %299 = vector.broadcast %298 : f32 to vector<8x1xf32>
      %300 = arith.addf %297, %299 : vector<8x1xf32>
      %301 = arith.negf %300 : vector<8x1xf32>
      %302 = math.exp %301 : vector<8x1xf32>
      %cst_67 = arith.constant 1.000000e+00 : f32
      %303 = vector.broadcast %cst_67 : f32 to vector<8x1xf32>
      %304 = arith.addf %303, %302 : vector<8x1xf32>
      %305 = arith.divf %303, %304 : vector<8x1xf32>
      %c0_68 = arith.constant 0 : index
      %c0_69 = arith.constant 0 : index
      %306 = vector.load %arg6[%c0_68, %c0_69] : memref<8x1xf32, #tpu.memory_space<vmem>>, vector<8x1xf32>
      tpu.vector_store %arg6[%c0_68, %c0_69], %305 {strides = array<i32>} : memref<8x1xf32, #tpu.memory_space<vmem>>, vector<8x1xf32>,
    } else {
    }
    return
  }
  func.func @transform_0(%arg0: i32, %arg1: memref<1xi32, #tpu.memory_space<smem>>) -> (i32, i32, i32) {
    %c0_i32 = arith.constant 0 : i32
    %c0_i32_0 = arith.constant 0 : i32
    %c0_i32_1 = arith.constant 0 : i32
    return %arg0, %c0_i32, %c0_i32_0 : i32, i32, i32
  }
  func.func @transform_1(%arg0: i32, %arg1: memref<1xi32, #tpu.memory_space<smem>>) -> (i32, i32) {
    %c0_i32 = arith.constant 0 : i32
    %c0_i32_0 = arith.constant 0 : i32
    %c0_i32_1 = arith.constant 0 : i32
    return %c0_i32, %c0_i32_0 : i32, i32
  }
  func.func @transform_2(%arg0: i32, %arg1: memref<1xi32, #tpu.memory_space<smem>>) -> (i32, i32) {
    %c0_i32 = arith.constant 0 : i32
    %c0_i32_0 = arith.constant 0 : i32
    %c0_i32_1 = arith.constant 0 : i32
    return %c0_i32, %c0_i32_0 : i32, i32
  }
  func.func @transform_3(%arg0: i32, %arg1: memref<1xi32, #tpu.memory_space<smem>>) -> (i32, i32) {
    %c0_i32 = arith.constant 0 : i32
    %c0_i32_0 = arith.constant 0 : i32
    %c0_i32_1 = arith.constant 0 : i32
    return %c0_i32, %c0_i32_0 : i32, i32
  }
  func.func @transform_4(%arg0: i32, %arg1: memref<1xi32, #tpu.memory_space<smem>>) -> (i32, i32) {
    %c0_i32 = arith.constant 0 : i32
    %c0_i32_0 = arith.constant 0 : i32
    %c0_i32_1 = arith.constant 0 : i32
    return %c0_i32, %c0_i32_0 : i32, i32
  }
}

</mosaic_0001>

<llo_original>
// kernel: tpu_custom_call.1
$region0: #{tpu_custom_call.1}
  #allocation0 [shape = 'u32[]', space=smem, size = 0x4, offset = 0x4, fixed_abs, tag = 'smem constant byte address 0x4 - core index']
  #allocation1 [shape = 'u32[144,128]{1,0:T(1,128)}', space=vmem, size = 0x12000, scoped, tag = 'internal scratch']
  #allocation2 [shape = 'f32[8,128]{1,0:T(8,128)}', space=vmem, size = 0x1000, scoped, tag = 'scratch operand']
  #allocation3 [shape = 'f32[8,128]{1,0:T(8,128)}', space=vmem, size = 0x1000, scoped, tag = 'scratch operand']
  #allocation4 [shape = 's32[1]{0}', space=sflag, size = 0x4, scoped, tag = 'scoped memory for tpu_custom_call.1']
  #allocation5 [shape = 's32[1]{0:T(128)S(6)}', space=smem, size = 0x200, scoped, tag = 'prefetched SMEM operand 0']
  #allocation6 [shape = 'f32[1,1]{1,0:T(1,128)S(6)}', space=smem, size = 0x200, scoped, tag = 'scoped memory for tpu_custom_call.1']
  %s0 = inlined_call_operand.<no memory space> [shape: s32[1], index: 0, kind: input, shape index: {}]
  %s1 = inlined_call_operand.hbm [shape: f32[8,8,512], index: 1, kind: input, shape index: {}]
  %s2 = inlined_call_operand.hbm [shape: bf16[128,512], index: 2, kind: input, shape index: {}]
  %s3 = inlined_call_operand.vmem [shape: f32[1,128], index: 3, kind: input, shape index: {}]
  %s4 = inlined_call_operand.<no memory space> [shape: f32[1,1], index: 4, kind: input, shape index: {}]
  %s5 = inlined_call_operand.vmem [shape: f32[8,1], index: 5, kind: output, shape index: {}]
  %s6 = sld [smem:[#allocation0]]
  $region42: #{tpu_custom_call.1} parent=0
    _
  %s8 = ssub.s32 1, %s6
  %s9 = scalar_select 0, %s8, %s6
  %10 = sst [smem:[#allocation5]] %s0
  %11 = sst [smem:[#allocation6]] %s4
  $region1: #{tpu_custom_call.1} parent=0
    #allocation7 [shape = 'u8[131072]{0}', space=vmem, size = 0x20000, scoped, tag = 'input window, operand 1, single buffered']
    #allocation8 [shape = 's32[1]{0}', space=sflag, size = 0x4, scoped, tag = 'scoped memory for tpu_custom_call.1']
    #allocation9 [shape = 'u8[131072]{0}', space=vmem, size = 0x20000, scoped, tag = 'input window, operand 2, single buffered']
    #allocation10 [shape = 's32[1]{0}', space=sflag, size = 0x4, scoped, tag = 'scoped memory for tpu_custom_call.1']
    %12 = vsyncpa [#allocation8], 0
    %13 = vsyncpa [#allocation10], 0
    // Predicated region
    $region2: #{tpu_custom_call.1} parent=1 // pred_check
      _
    $region3: #{tpu_custom_call.1} parent=1 // pred_check_branch
      %15 = sbr.rel (0) target = $region5
    $region4: #{tpu_custom_call.1} parent=1 // pred_region
      %s17 = ssub.s32 4096, 4096
      %18 = vsyncadd [#allocation8], %s17
      %s19 = sshll.u32 [#allocation7], 4
      %s20 = int_to_ptr.vmem [resolvable:$true] %s19
      %25 = dma.hbm_to_vmem [thread:$0]  %s1, 4096, %s20, [#allocation8], 512, 512, 32
    $region5: #{tpu_custom_call.1} parent=1 // pred_fallthru
      _
    // Predicated region
    $region6: #{tpu_custom_call.1} parent=1 // pred_check
      _
    $region7: #{tpu_custom_call.1} parent=1 // pred_check_branch
      %27 = sbr.rel (0) target = $region9
    $region8: #{tpu_custom_call.1} parent=1 // pred_region
      %s29 = ssub.s32 4096, 4096
      %30 = vsyncadd [#allocation10], %s29
      %s31 = sshll.u32 [#allocation9], 4
      %s32 = int_to_ptr.vmem [resolvable:$true] %s31
      %37 = dma.hbm_to_vmem [thread:$0]  %s2, 4096, %s32, [#allocation10], 256, 256, 16
    $region9: #{tpu_custom_call.1} parent=1 // pred_fallthru
      _
    // Predicated region
    $region10: #{tpu_custom_call.1} parent=1 // pred_check
      _
    $region11: #{tpu_custom_call.1} parent=1 // pred_check_branch
      %39 = sbr.rel (0) target = $region13
    $region12: #{tpu_custom_call.1} parent=1 // pred_region
      _
    $region13: #{tpu_custom_call.1} parent=1 // pred_fallthru
      _
    // Predicated region
    $region14: #{tpu_custom_call.1} parent=1 // pred_check
      _
    $region15: #{tpu_custom_call.1} parent=1 // pred_check_branch
      %41 = sbr.rel (0) target = $region17
    $region16: #{tpu_custom_call.1} parent=1 // pred_region
      _
    $region17: #{tpu_custom_call.1} parent=1 // pred_fallthru
      _
    // Predicated region
    $region18: #{tpu_custom_call.1} parent=1 // pred_check
      _
    $region19: #{tpu_custom_call.1} parent=1 // pred_check_branch
      %43 = sbr.rel (0) target = $region21
    $region20: #{tpu_custom_call.1} parent=1 // pred_region
      %44 = dma.done [#allocation8], 4096
    $region21: #{tpu_custom_call.1} parent=1 // pred_fallthru
      _
    // Predicated region
    $region22: #{tpu_custom_call.1} parent=1 // pred_check
      _
    $region23: #{tpu_custom_call.1} parent=1 // pred_check_branch
      %46 = sbr.rel (0) target = $region25
    $region24: #{tpu_custom_call.1} parent=1 // pred_region
      %47 = dma.done [#allocation10], 4096
    $region25: #{tpu_custom_call.1} parent=1 // pred_fallthru
      _
    %p49 = scmp.eq.s32.totalorder 0, 0
    // Predicated region
    $region26: #{tpu_custom_call.1} parent=1 // pred_check
      %p50 = pneg %p49
    $region27: #{tpu_custom_call.1} parent=1 // pred_check_branch
      %52 = sbr.rel (%p50) target = $region29
    $region28: #{tpu_custom_call.1} parent=1 // pred_region
      %53 = vst [vmem:[#allocation2] sm:$0xff] 0.0
      %54 = vst [vmem:[#allocation3] sm:$0xff] 0.0
    $region29: #{tpu_custom_call.1} parent=1 // pred_fallthru
      _
    %s55 = sld [smem:[#allocation5]]
    %s56 = smul.u32 0, 8
    %v57 = vld [vmem:[#allocation9] sm:$0xff]
    %v58 = vld [vmem:[#allocation9 + $0x8] sm:$0xff]
    %v59 = vld [vmem:[#allocation9 + $0x10] sm:$0xff]
    %v60 = vld [vmem:[#allocation9 + $0x18] sm:$0xff]
    %v61 = vld [vmem:[#allocation9 + $0x20] sm:$0xff]
    %v62 = vld [vmem:[#allocation9 + $0x28] sm:$0xff]
    %v63 = vld [vmem:[#allocation9 + $0x30] sm:$0xff]
    %v64 = vld [vmem:[#allocation9 + $0x38] sm:$0xff]
    %v65 = vld [vmem:[#allocation9 + $0x40] sm:$0xff]
    %v66 = vld [vmem:[#allocation9 + $0x48] sm:$0xff]
    %v67 = vld [vmem:[#allocation9 + $0x50] sm:$0xff]
    %v68 = vld [vmem:[#allocation9 + $0x58] sm:$0xff]
    %v69 = vld [vmem:[#allocation9 + $0x60] sm:$0xff]
    %v70 = vld [vmem:[#allocation9 + $0x68] sm:$0xff]
    %v71 = vld [vmem:[#allocation9 + $0x70] sm:$0xff]
    %v72 = vld [vmem:[#allocation9 + $0x78] sm:$0xff]
    %v73 = vld [vmem:[#allocation9 + $0x80] sm:$0xff]
    %v74 = vld [vmem:[#allocation9 + $0x88] sm:$0xff]
    %v75 = vld [vmem:[#allocation9 + $0x90] sm:$0xff]
    %v76 = vld [vmem:[#allocation9 + $0x98] sm:$0xff]
    %v77 = vld [vmem:[#allocation9 + $0xa0] sm:$0xff]
    %v78 = vld [vmem:[#allocation9 + $0xa8] sm:$0xff]
    %v79 = vld [vmem:[#allocation9 + $0xb0] sm:$0xff]
    %v80 = vld [vmem:[#allocation9 + $0xb8] sm:$0xff]
    %v81 = vld [vmem:[#allocation9 + $0xc0] sm:$0xff]
    %v82 = vld [vmem:[#allocation9 + $0xc8] sm:$0xff]
    %v83 = vld [vmem:[#allocation9 + $0xd0] sm:$0xff]
    %v84 = vld [vmem:[#allocation9 + $0xd8] sm:$0xff]
    %v85 = vld [vmem:[#allocation9 + $0xe0] sm:$0xff]
    %v86 = vld [vmem:[#allocation9 + $0xe8] sm:$0xff]
    %v87 = vld [vmem:[#allocation9 + $0xf0] sm:$0xff]
    %v88 = vld [vmem:[#allocation9 + $0xf8] sm:$0xff]
    %v89 = vld [vmem:[#allocation2] sm:$0xff]
    %v90 = vld [vmem:[#allocation3] sm:$0xff]
    %v91 = vld [vmem:[#allocation7] sm:$0xff]
    %v92 = vld [vmem:[#allocation7 + $0x8] sm:$0xff]
    %v93 = vld [vmem:[#allocation7 + $0x10] sm:$0xff]
    %v94 = vld [vmem:[#allocation7 + $0x18] sm:$0xff]
    %v95 = vpack.c.bf16 %v89, %v89
    %v128 = vunpack.c.l.b16 %v57
    %v129 = vunpack.c.h.b16 %v57
    %v130 = vunpack.c.l.b16 %v58
    %v131 = vunpack.c.h.b16 %v58
    %v132 = vunpack.c.l.b16 %v59
    %v133 = vunpack.c.h.b16 %v59
    %v134 = vunpack.c.l.b16 %v60
    %v135 = vunpack.c.h.b16 %v60
    %v136 = vunpack.c.l.b16 %v61
    %v137 = vunpack.c.h.b16 %v61
    %v138 = vunpack.c.l.b16 %v62
    %v139 = vunpack.c.h.b16 %v62
    %v140 = vunpack.c.l.b16 %v63
    %v141 = vunpack.c.h.b16 %v63
    %v142 = vunpack.c.l.b16 %v64
    %v143 = vunpack.c.h.b16 %v64
    %v144 = vunpack.c.l.b16 %v65
    %v145 = vunpack.c.h.b16 %v65
    %v146 = vunpack.c.l.b16 %v66
    %v147 = vunpack.c.h.b16 %v66
    %v148 = vunpack.c.l.b16 %v67
    %v149 = vunpack.c.h.b16 %v67
    %v150 = vunpack.c.l.b16 %v68
    %v151 = vunpack.c.h.b16 %v68
    %v152 = vunpack.c.l.b16 %v69
    %v153 = vunpack.c.h.b16 %v69
    %v154 = vunpack.c.l.b16 %v70
    %v155 = vunpack.c.h.b16 %v70
    %v156 = vunpack.c.l.b16 %v71
    %v157 = vunpack.c.h.b16 %v71
    %v158 = vunpack.c.l.b16 %v72
    %v159 = vunpack.c.h.b16 %v72
    %v160 = vunpack.c.l.b16 %v73
    %v161 = vunpack.c.h.b16 %v73
    %v162 = vunpack.c.l.b16 %v74
    %v163 = vunpack.c.h.b16 %v74
    %v164 = vunpack.c.l.b16 %v75
    %v165 = vunpack.c.h.b16 %v75
    %v166 = vunpack.c.l.b16 %v76
    %v167 = vunpack.c.h.b16 %v76
    %v168 = vunpack.c.l.b16 %v77
    %v169 = vunpack.c.h.b16 %v77
    %v170 = vunpack.c.l.b16 %v78
    %v171 = vunpack.c.h.b16 %v78
    %v172 = vunpack.c.l.b16 %v79
    %v173 = vunpack.c.h.b16 %v79
    %v174 = vunpack.c.l.b16 %v80
    %v175 = vunpack.c.h.b16 %v80
    %v176 = vunpack.c.l.b16 %v81
    %v177 = vunpack.c.h.b16 %v81
    %v178 = vunpack.c.l.b16 %v82
    %v179 = vunpack.c.h.b16 %v82
    %v180 = vunpack.c.l.b16 %v83
    %v181 = vunpack.c.h.b16 %v83
    %v182 = vunpack.c.l.b16 %v84
    %v183 = vunpack.c.h.b16 %v84
    %v184 = vunpack.c.l.b16 %v85
    %v185 = vunpack.c.h.b16 %v85
    %v186 = vunpack.c.l.b16 %v86
    %v187 = vunpack.c.h.b16 %v86
    %v188 = vunpack.c.l.b16 %v87
    %v189 = vunpack.c.h.b16 %v87
    %v190 = vunpack.c.l.b16 %v88
    %v191 = vunpack.c.h.b16 %v88
    %v192 = vpack.c.b16 %v132, %v128
    %v193 = vpack.c.b16 %v133, %v129
    %v194 = vpack.c.b16 %v134, %v130
    %v195 = vpack.c.b16 %v135, %v131
    %v196 = vpack.c.b16 %v140, %v136
    %v197 = vpack.c.b16 %v141, %v137
    %v198 = vpack.c.b16 %v142, %v138
    %v199 = vpack.c.b16 %v143, %v139
    %v200 = vpack.c.b16 %v148, %v144
    %v201 = vpack.c.b16 %v149, %v145
    %v202 = vpack.c.b16 %v150, %v146
    %v203 = vpack.c.b16 %v151, %v147
    %v204 = vpack.c.b16 %v156, %v152
    %v205 = vpack.c.b16 %v157, %v153
    %v206 = vpack.c.b16 %v158, %v154
    %v207 = vpack.c.b16 %v159, %v155
    %v208 = vpack.c.b16 %v164, %v160
    %v209 = vpack.c.b16 %v165, %v161
    %v210 = vpack.c.b16 %v166, %v162
    %v211 = vpack.c.b16 %v167, %v163
    %v212 = vpack.c.b16 %v172, %v168
    %v213 = vpack.c.b16 %v173, %v169
    %v214 = vpack.c.b16 %v174, %v170
    %v215 = vpack.c.b16 %v175, %v171
    %v216 = vpack.c.b16 %v180, %v176
    %v217 = vpack.c.b16 %v181, %v177
    %v218 = vpack.c.b16 %v182, %v178
    %v219 = vpack.c.b16 %v183, %v179
    %v220 = vpack.c.b16 %v188, %v184
    %v221 = vpack.c.b16 %v189, %v185
    %v222 = vpack.c.b16 %v190, %v186
    %v223 = vpack.c.b16 %v191, %v187
    %256 = vmatprep.subr.bf16.mxu0 %v221
    %257 = vmatpush1.bf16.msra.mxu0 %v220
    %258 = vmatprep.subr.bf16.mxu0 %v217
    %259 = vmatpush1.bf16.msra.mxu0 %v216
    %260 = vmatprep.subr.bf16.mxu0 %v213
    %261 = vmatpush1.bf16.msra.mxu0 %v212
    %262 = vmatprep.subr.bf16.mxu0 %v209
    %263 = vmatpush1.bf16.msra.mxu0 %v208
    %264 = vmatprep.subr.bf16.mxu0 %v205
    %265 = vmatpush1.bf16.msra.mxu0 %v204
    %266 = vmatprep.subr.bf16.mxu0 %v201
    %267 = vmatpush1.bf16.msra.mxu0 %v200
    %268 = vmatprep.subr.bf16.mxu0 %v197
    %269 = vmatpush1.bf16.msra.mxu0 %v196
    %270 = vmatprep.subr.bf16.mxu0 %v193
    %271 = vmatpush1.bf16.msra.mxu0 %v192
    %272 = vmatprep.subr.bf16.mxu0 0
    %273 = vmatpush2.bf16.msra.mxu0 0
    %274 = vmatprep.subr.bf16.mxu0 0
    %275 = vmatpush2.bf16.msra.mxu0 0
    %276 = vmatprep.subr.bf16.mxu0 0
    %277 = vmatpush2.bf16.msra.mxu0 0
    %278 = vmatprep.subr.bf16.mxu0 0
    %279 = vmatpush2.bf16.msra.mxu0 0
    %280 = vmatprep.subr.bf16.mxu0 0
    %281 = vmatpush2.bf16.msra.mxu0 0
    %282 = vmatprep.subr.bf16.mxu0 0
    %283 = vmatpush2.bf16.msra.mxu0 0
    %284 = vmatprep.subr.bf16.mxu0 0
    %285 = vmatpush2.bf16.msra.mxu0 0
    %286 = vmatprep.subr.bf16.mxu0 0
    %287 = vmatpush2.bf16.msra.mxu0 0
    %288 = vmatprep.mubr.bf16.mxu0 0
    %289 = vmatmul.mubr.bf16.gmra.mxu0 %v95
    %v290 = vpop.f32.mrf.mxu0
    %v291 = vadd.f32 0.0, %v290
    %v292 = vpop.f32.mrf.mxu0
    %v293 = vadd.f32 0.0, %v292
    %v294 = vpop.f32.mrf.mxu0
    %v295 = vpop.f32.mrf.mxu0
    %296 = vdwg.mxu0
    %297 = vmatprep.subr.bf16.mxu0 %v223
    %298 = vmatpush1.bf16.msra.mxu0 %v222
    %299 = vmatprep.subr.bf16.mxu0 %v219
    %300 = vmatpush1.bf16.msra.mxu0 %v218
    %301 = vmatprep.subr.bf16.mxu0 %v215
    %302 = vmatpush1.bf16.msra.mxu0 %v214
    %303 = vmatprep.subr.bf16.mxu0 %v211
    %304 = vmatpush1.bf16.msra.mxu0 %v210
    %305 = vmatprep.subr.bf16.mxu0 %v207
    %306 = vmatpush1.bf16.msra.mxu0 %v206
    %307 = vmatprep.subr.bf16.mxu0 %v203
    %308 = vmatpush1.bf16.msra.mxu0 %v202
    %309 = vmatprep.subr.bf16.mxu0 %v199
    %310 = vmatpush1.bf16.msra.mxu0 %v198
    %311 = vmatprep.subr.bf16.mxu0 %v195
    %312 = vmatpush1.bf16.msra.mxu0 %v194
    %313 = vmatprep.subr.bf16.mxu0 0
    %314 = vmatpush2.bf16.msra.mxu0 0
    %315 = vmatprep.subr.bf16.mxu0 0
    %316 = vmatpush2.bf16.msra.mxu0 0
    %317 = vmatprep.subr.bf16.mxu0 0
    %318 = vmatpush2.bf16.msra.mxu0 0
    %319 = vmatprep.subr.bf16.mxu0 0
    %320 = vmatpush2.bf16.msra.mxu0 0
    %321 = vmatprep.subr.bf16.mxu0 0
    %322 = vmatpush2.bf16.msra.mxu0 0
    %323 = vmatprep.subr.bf16.mxu0 0
    %324 = vmatpush2.bf16.msra.mxu0 0
    %325 = vmatprep.subr.bf16.mxu0 0
    %326 = vmatpush2.bf16.msra.mxu0 0
    %327 = vmatprep.subr.bf16.mxu0 0
    %328 = vmatpush2.bf16.msra.mxu0 0
    %329 = vmatprep.mubr.bf16.mxu0 0
    %330 = vmatmul.mubr.bf16.gmra.mxu0 %v95
    %v331 = vpop.f32.mrf.mxu0
    %v332 = vadd.f32 0.0, %v331
    %v333 = vpop.f32.mrf.mxu0
    %v334 = vadd.f32 0.0, %v333
    %v335 = vpop.f32.mrf.mxu0
    %v336 = vpop.f32.mrf.mxu0
    %337 = vdwg.mxu0
    %v338 = vadd.f32 %v91, %v291
    %v339 = vadd.f32 %v92, %v293
    %v340 = vadd.f32 %v93, %v332
    %v341 = vadd.f32 %v94, %v334
    %v342 = vxor.u32 %v338, 2147483648
    %v343 = vmul.f32 %v342, 1.442695
    %v344 = vpow.pop %v343
    %v345 = vadd.f32 %v344, 1.0
    %v346 = vrcp.pop %v345
    %v347 = vmul.f32 1.0, %v346
    %v348 = vxor.u32 %v339, 2147483648
    %v349 = vmul.f32 %v348, 1.442695
    %v350 = vpow.pop %v349
    %v351 = vadd.f32 %v350, 1.0
    %v352 = vrcp.pop %v351
    %v353 = vmul.f32 1.0, %v352
    %v354 = vtanh.pop %v340
    %v355 = vxor.u32 %v341, 2147483648
    %v356 = vmul.f32 %v355, 1.442695
    %v357 = vpow.pop %v356
    %v358 = vadd.f32 %v357, 1.0
    %v359 = vrcp.pop %v358
    %v360 = vmul.f32 1.0, %v359
    %v361 = vmul.f32 %v353, %v90
    %v362 = vmul.f32 %v347, %v354
    %v363 = vadd.f32 %v361, %v362
    %v364 = vtanh.pop %v363
    %v365 = vmul.f32 %v360, %v364
    %p366 = scmp.lt.s32.totalorder %s56, %s55
    %s367 = scalar_select %p366, 1, 0
    %v368 = vstv %s367
    %vm369 = vcmp.eq.s32.totalorder %v368, 1
    %v370 = vsel %vm369, %v365, %v89
    %v371 = vsel %vm369, %v363, %v90
    %s372 = scalar_lea.vmem [#allocation7], 32
    %v373 = vld [vmem:[%s372] sm:$0xff]
    %v374 = vld [vmem:[%s372 + $0x8] sm:$0xff]
    %v375 = vld [vmem:[%s372 + $0x10] sm:$0xff]
    %v376 = vld [vmem:[%s372 + $0x18] sm:$0xff]
    %v377 = vpack.c.bf16 %v370, %v370
    %378 = vmatprep.subr.bf16.mxu0 %v221
    %379 = vmatpush1.bf16.msra.mxu0 %v220
    %380 = vmatprep.subr.bf16.mxu0 %v217
    %381 = vmatpush1.bf16.msra.mxu0 %v216
    %382 = vmatprep.subr.bf16.mxu0 %v213
    %383 = vmatpush1.bf16.msra.mxu0 %v212
    %384 = vmatprep.subr.bf16.mxu0 %v209
    %385 = vmatpush1.bf16.msra.mxu0 %v208
    %386 = vmatprep.subr.bf16.mxu0 %v205
    %387 = vmatpush1.bf16.msra.mxu0 %v204
    %388 = vmatprep.subr.bf16.mxu0 %v201
    %389 = vmatpush1.bf16.msra.mxu0 %v200
    %390 = vmatprep.subr.bf16.mxu0 %v197
    %391 = vmatpush1.bf16.msra.mxu0 %v196
    %392 = vmatprep.subr.bf16.mxu0 %v193
    %393 = vmatpush1.bf16.msra.mxu0 %v192
    %394 = vmatprep.subr.bf16.mxu0 0
    %395 = vmatpush2.bf16.msra.mxu0 0
    %396 = vmatprep.subr.bf16.mxu0 0
    %397 = vmatpush2.bf16.msra.mxu0 0
    %398 = vmatprep.subr.bf16.mxu0 0
    %399 = vmatpush2.bf16.msra.mxu0 0
    %400 = vmatprep.subr.bf16.mxu0 0
    %401 = vmatpush2.bf16.msra.mxu0 0
    %402 = vmatprep.subr.bf16.mxu0 0
    %403 = vmatpush2.bf16.msra.mxu0 0
    %404 = vmatprep.subr.bf16.mxu0 0
    %405 = vmatpush2.bf16.msra.mxu0 0
    %406 = vmatprep.subr.bf16.mxu0 0
    %407 = vmatpush2.bf16.msra.mxu0 0
    %408 = vmatprep.subr.bf16.mxu0 0
    %409 = vmatpush2.bf16.msra.mxu0 0
    %410 = vmatprep.mubr.bf16.mxu0 0
    %411 = vmatmul.mubr.bf16.gmra.mxu0 %v377
    %v412 = vpop.f32.mrf.mxu0
    %v413 = vadd.f32 0.0, %v412
    %v414 = vpop.f32.mrf.mxu0
    %v415 = vadd.f32 0.0, %v414
    %v416 = vpop.f32.mrf.mxu0
    %v417 = vpop.f32.mrf.mxu0
    %418 = vdwg.mxu0
    %419 = vmatprep.subr.bf16.mxu0 %v223
    %420 = vmatpush1.bf16.msra.mxu0 %v222
    %421 = vmatprep.subr.bf16.mxu0 %v219
    %422 = vmatpush1.bf16.msra.mxu0 %v218
    %423 = vmatprep.subr.bf16.mxu0 %v215
    %424 = vmatpush1.bf16.msra.mxu0 %v214
    %425 = vmatprep.subr.bf16.mxu0 %v211
    %426 = vmatpush1.bf16.msra.mxu0 %v210
    %427 = vmatprep.subr.bf16.mxu0 %v207
    %428 = vmatpush1.bf16.msra.mxu0 %v206
    %429 = vmatprep.subr.bf16.mxu0 %v203
    %430 = vmatpush1.bf16.msra.mxu0 %v202
    %431 = vmatprep.subr.bf16.mxu0 %v199
    %432 = vmatpush1.bf16.msra.mxu0 %v198
    %433 = vmatprep.subr.bf16.mxu0 %v195
    %434 = vmatpush1.bf16.msra.mxu0 %v194
    %435 = vmatprep.subr.bf16.mxu0 0
    %436 = vmatpush2.bf16.msra.mxu0 0
    %437 = vmatprep.subr.bf16.mxu0 0
    %438 = vmatpush2.bf16.msra.mxu0 0
    %439 = vmatprep.subr.bf16.mxu0 0
    %440 = vmatpush2.bf16.msra.mxu0 0
    %441 = vmatprep.subr.bf16.mxu0 0
    %442 = vmatpush2.bf16.msra.mxu0 0
    %443 = vmatprep.subr.bf16.mxu0 0
    %444 = vmatpush2.bf16.msra.mxu0 0
    %445 = vmatprep.subr.bf16.mxu0 0
    %446 = vmatpush2.bf16.msra.mxu0 0
    %447 = vmatprep.subr.bf16.mxu0 0
    %448 = vmatpush2.bf16.msra.mxu0 0
    %449 = vmatprep.subr.bf16.mxu0 0
    %450 = vmatpush2.bf16.msra.mxu0 0
    %451 = vmatprep.mubr.bf16.mxu0 0
    %452 = vmatmul.mubr.bf16.gmra.mxu0 %v377
    %v453 = vpop.f32.mrf.mxu0
    %v454 = vadd.f32 0.0, %v453
    %v455 = vpop.f32.mrf.mxu0
    %v456 = vadd.f32 0.0, %v455
    %v457 = vpop.f32.mrf.mxu0
    %v458 = vpop.f32.mrf.mxu0
    %459 = vdwg.mxu0
    %v460 = vadd.f32 %v373, %v413
    %v461 = vadd.f32 %v374, %v415
    %v462 = vadd.f32 %v375, %v454
    %v463 = vadd.f32 %v376, %v456
    %v464 = vxor.u32 %v460, 2147483648
    %v465 = vmul.f32 %v464, 1.442695
    %v466 = vpow.pop %v465
    %v467 = vadd.f32 %v466, 1.0
    %v468 = vrcp.pop %v467
    %v469 = vmul.f32 1.0, %v468
    %v470 = vxor.u32 %v461, 2147483648
    %v471 = vmul.f32 %v470, 1.442695
    %v472 = vpow.pop %v471
    %v473 = vadd.f32 %v472, 1.0
    %v474 = vrcp.pop %v473
    %v475 = vmul.f32 1.0, %v474
    %v476 = vtanh.pop %v462
    %v477 = vxor.u32 %v463, 2147483648
    %v478 = vmul.f32 %v477, 1.442695
    %v479 = vpow.pop %v478
    %v480 = vadd.f32 %v479, 1.0
    %v481 = vrcp.pop %v480
    %v482 = vmul.f32 1.0, %v481
    %v483 = vmul.f32 %v475, %v371
    %v484 = vmul.f32 %v469, %v476
    %v485 = vadd.f32 %v483, %v484
    %v486 = vtanh.pop %v485
    %v487 = vmul.f32 %v482, %v486
    %s488 = sadd.s32 %s56, 1
    %p489 = scmp.lt.s32.totalorder %s488, %s55
    %s490 = scalar_select %p489, 1, 0
    %v491 = vstv %s490
    %vm492 = vcmp.eq.s32.totalorder %v491, 1
    %v493 = vsel %vm492, %v487, %v370
    %v494 = vsel %vm492, %v485, %v371
    %s495 = scalar_lea.vmem [#allocation7], 64
    %v496 = vld [vmem:[%s495] sm:$0xff]
    %v497 = vld [vmem:[%s495 + $0x8] sm:$0xff]
    %v498 = vld [vmem:[%s495 + $0x10] sm:$0xff]
    %v499 = vld [vmem:[%s495 + $0x18] sm:$0xff]
    %v500 = vpack.c.bf16 %v493, %v493
    %501 = vmatprep.subr.bf16.mxu0 %v221
    %502 = vmatpush1.bf16.msra.mxu0 %v220
    %503 = vmatprep.subr.bf16.mxu0 %v217
    %504 = vmatpush1.bf16.msra.mxu0 %v216
    %505 = vmatprep.subr.bf16.mxu0 %v213
    %506 = vmatpush1.bf16.msra.mxu0 %v212
    %507 = vmatprep.subr.bf16.mxu0 %v209
    %508 = vmatpush1.bf16.msra.mxu0 %v208
    %509 = vmatprep.subr.bf16.mxu0 %v205
    %510 = vmatpush1.bf16.msra.mxu0 %v204
    %511 = vmatprep.subr.bf16.mxu0 %v201
    %512 = vmatpush1.bf16.msra.mxu0 %v200
    %513 = vmatprep.subr.bf16.mxu0 %v197
    %514 = vmatpush1.bf16.msra.mxu0 %v196
    %515 = vmatprep.subr.bf16.mxu0 %v193
    %516 = vmatpush1.bf16.msra.mxu0 %v192
    %517 = vmatprep.subr.bf16.mxu0 0
    %518 = vmatpush2.bf16.msra.mxu0 0
    %519 = vmatprep.subr.bf16.mxu0 0
    %520 = vmatpush2.bf16.msra.mxu0 0
    %521 = vmatprep.subr.bf16.mxu0 0
    %522 = vmatpush2.bf16.msra.mxu0 0
    %523 = vmatprep.subr.bf16.mxu0 0
    %524 = vmatpush2.bf16.msra.mxu0 0
    %525 = vmatprep.subr.bf16.mxu0 0
    %526 = vmatpush2.bf16.msra.mxu0 0
    %527 = vmatprep.subr.bf16.mxu0 0
    %528 = vmatpush2.bf16.msra.mxu0 0
    %529 = vmatprep.subr.bf16.mxu0 0
    %530 = vmatpush2.bf16.msra.mxu0 0
    %531 = vmatprep.subr.bf16.mxu0 0
    %532 = vmatpush2.bf16.msra.mxu0 0
    %533 = vmatprep.mubr.bf16.mxu0 0
    %534 = vmatmul.mubr.bf16.gmra.mxu0 %v500
    %v535 = vpop.f32.mrf.mxu0
    %v536 = vadd.f32 0.0, %v535
    %v537 = vpop.f32.mrf.mxu0
    %v538 = vadd.f32 0.0, %v537
    %v539 = vpop.f32.mrf.mxu0
    %v540 = vpop.f32.mrf.mxu0
    %541 = vdwg.mxu0
    %542 = vmatprep.subr.bf16.mxu0 %v223
    %543 = vmatpush1.bf16.msra.mxu0 %v222
    %544 = vmatprep.subr.bf16.mxu0 %v219
    %545 = vmatpush1.bf16.msra.mxu0 %v218
    %546 = vmatprep.subr.bf16.mxu0 %v215
    %547 = vmatpush1.bf16.msra.mxu0 %v214
    %548 = vmatprep.subr.bf16.mxu0 %v211
    %549 = vmatpush1.bf16.msra.mxu0 %v210
    %550 = vmatprep.subr.bf16.mxu0 %v207
    %551 = vmatpush1.bf16.msra.mxu0 %v206
    %552 = vmatprep.subr.bf16.mxu0 %v203
    %553 = vmatpush1.bf16.msra.mxu0 %v202
    %554 = vmatprep.subr.bf16.mxu0 %v199
    %555 = vmatpush1.bf16.msra.mxu0 %v198
    %556 = vmatprep.subr.bf16.mxu0 %v195
    %557 = vmatpush1.bf16.msra.mxu0 %v194
    %558 = vmatprep.subr.bf16.mxu0 0
    %559 = vmatpush2.bf16.msra.mxu0 0
    %560 = vmatprep.subr.bf16.mxu0 0
    %561 = vmatpush2.bf16.msra.mxu0 0
    %562 = vmatprep.subr.bf16.mxu0 0
    %563 = vmatpush2.bf16.msra.mxu0 0
    %564 = vmatprep.subr.bf16.mxu0 0
    %565 = vmatpush2.bf16.msra.mxu0 0
    %566 = vmatprep.subr.bf16.mxu0 0
    %567 = vmatpush2.bf16.msra.mxu0 0
    %568 = vmatprep.subr.bf16.mxu0 0
    %569 = vmatpush2.bf16.msra.mxu0 0
    %570 = vmatprep.subr.bf16.mxu0 0
    %571 = vmatpush2.bf16.msra.mxu0 0
    %572 = vmatprep.subr.bf16.mxu0 0
    %573 = vmatpush2.bf16.msra.mxu0 0
    %574 = vmatprep.mubr.bf16.mxu0 0
    %575 = vmatmul.mubr.bf16.gmra.mxu0 %v500
    %v576 = vpop.f32.mrf.mxu0
    %v577 = vadd.f32 0.0, %v576
    %v578 = vpop.f32.mrf.mxu0
    %v579 = vadd.f32 0.0, %v578
    %v580 = vpop.f32.mrf.mxu0
    %v581 = vpop.f32.mrf.mxu0
    %582 = vdwg.mxu0
    %v583 = vadd.f32 %v496, %v536
    %v584 = vadd.f32 %v497, %v538
    %v585 = vadd.f32 %v498, %v577
    %v586 = vadd.f32 %v499, %v579
    %v587 = vxor.u32 %v583, 2147483648
    %v588 = vmul.f32 %v587, 1.442695
    %v589 = vpow.pop %v588
    %v590 = vadd.f32 %v589, 1.0
    %v591 = vrcp.pop %v590
    %v592 = vmul.f32 1.0, %v591
    %v593 = vxor.u32 %v584, 2147483648
    %v594 = vmul.f32 %v593, 1.442695
    %v595 = vpow.pop %v594
    %v596 = vadd.f32 %v595, 1.0
    %v597 = vrcp.pop %v596
    %v598 = vmul.f32 1.0, %v597
    %v599 = vtanh.pop %v585
    %v600 = vxor.u32 %v586, 2147483648
    %v601 = vmul.f32 %v600, 1.442695
    %v602 = vpow.pop %v601
    %v603 = vadd.f32 %v602, 1.0
    %v604 = vrcp.pop %v603
    %v605 = vmul.f32 1.0, %v604
    %v606 = vmul.f32 %v598, %v494
    %v607 = vmul.f32 %v592, %v599
    %v608 = vadd.f32 %v606, %v607
    %v609 = vtanh.pop %v608
    %v610 = vmul.f32 %v605, %v609
    %s611 = sadd.s32 %s56, 2
    %p612 = scmp.lt.s32.totalorder %s611, %s55
    %s613 = scalar_select %p612, 1, 0
    %v614 = vstv %s613
    %vm615 = vcmp.eq.s32.totalorder %v614, 1
    %v616 = vsel %vm615, %v610, %v493
    %v617 = vsel %vm615, %v608, %v494
    %s618 = scalar_lea.vmem [#allocation7], 96
    %v619 = vld [vmem:[%s618] sm:$0xff]
    %v620 = vld [vmem:[%s618 + $0x8] sm:$0xff]
    %v621 = vld [vmem:[%s618 + $0x10] sm:$0xff]
    %v622 = vld [vmem:[%s618 + $0x18] sm:$0xff]
    %v623 = vpack.c.bf16 %v616, %v616
    %624 = vmatprep.subr.bf16.mxu0 %v221
    %625 = vmatpush1.bf16.msra.mxu0 %v220
    %626 = vmatprep.subr.bf16.mxu0 %v217
    %627 = vmatpush1.bf16.msra.mxu0 %v216
    %628 = vmatprep.subr.bf16.mxu0 %v213
    %629 = vmatpush1.bf16.msra.mxu0 %v212
    %630 = vmatprep.subr.bf16.mxu0 %v209
    %631 = vmatpush1.bf16.msra.mxu0 %v208
    %632 = vmatprep.subr.bf16.mxu0 %v205
    %633 = vmatpush1.bf16.msra.mxu0 %v204
    %634 = vmatprep.subr.bf16.mxu0 %v201
    %635 = vmatpush1.bf16.msra.mxu0 %v200
    %636 = vmatprep.subr.bf16.mxu0 %v197
    %637 = vmatpush1.bf16.msra.mxu0 %v196
    %638 = vmatprep.subr.bf16.mxu0 %v193
    %639 = vmatpush1.bf16.msra.mxu0 %v192
    %640 = vmatprep.subr.bf16.mxu0 0
    %641 = vmatpush2.bf16.msra.mxu0 0
    %642 = vmatprep.subr.bf16.mxu0 0
    %643 = vmatpush2.bf16.msra.mxu0 0
    %644 = vmatprep.subr.bf16.mxu0 0
    %645 = vmatpush2.bf16.msra.mxu0 0
    %646 = vmatprep.subr.bf16.mxu0 0
    %647 = vmatpush2.bf16.msra.mxu0 0
    %648 = vmatprep.subr.bf16.mxu0 0
    %649 = vmatpush2.bf16.msra.mxu0 0
    %650 = vmatprep.subr.bf16.mxu0 0
    %651 = vmatpush2.bf16.msra.mxu0 0
    %652 = vmatprep.subr.bf16.mxu0 0
    %653 = vmatpush2.bf16.msra.mxu0 0
    %654 = vmatprep.subr.bf16.mxu0 0
    %655 = vmatpush2.bf16.msra.mxu0 0
    %656 = vmatprep.mubr.bf16.mxu0 0
    %657 = vmatmul.mubr.bf16.gmra.mxu0 %v623
    %v658 = vpop.f32.mrf.mxu0
    %v659 = vadd.f32 0.0, %v658
    %v660 = vpop.f32.mrf.mxu0
    %v661 = vadd.f32 0.0, %v660
    %v662 = vpop.f32.mrf.mxu0
    %v663 = vpop.f32.mrf.mxu0
    %664 = vdwg.mxu0
    %665 = vmatprep.subr.bf16.mxu0 %v223
    %666 = vmatpush1.bf16.msra.mxu0 %v222
    %667 = vmatprep.subr.bf16.mxu0 %v219
    %668 = vmatpush1.bf16.msra.mxu0 %v218
    %669 = vmatprep.subr.bf16.mxu0 %v215
    %670 = vmatpush1.bf16.msra.mxu0 %v214
    %671 = vmatprep.subr.bf16.mxu0 %v211
    %672 = vmatpush1.bf16.msra.mxu0 %v210
    %673 = vmatprep.subr.bf16.mxu0 %v207
    %674 = vmatpush1.bf16.msra.mxu0 %v206
    %675 = vmatprep.subr.bf16.mxu0 %v203
    %676 = vmatpush1.bf16.msra.mxu0 %v202
    %677 = vmatprep.subr.bf16.mxu0 %v199
    %678 = vmatpush1.bf16.msra.mxu0 %v198
    %679 = vmatprep.subr.bf16.mxu0 %v195
    %680 = vmatpush1.bf16.msra.mxu0 %v194
    %681 = vmatprep.subr.bf16.mxu0 0
    %682 = vmatpush2.bf16.msra.mxu0 0
    %683 = vmatprep.subr.bf16.mxu0 0
    %684 = vmatpush2.bf16.msra.mxu0 0
    %685 = vmatprep.subr.bf16.mxu0 0
    %686 = vmatpush2.bf16.msra.mxu0 0
    %687 = vmatprep.subr.bf16.mxu0 0
    %688 = vmatpush2.bf16.msra.mxu0 0
    %689 = vmatprep.subr.bf16.mxu0 0
    %690 = vmatpush2.bf16.msra.mxu0 0
    %691 = vmatprep.subr.bf16.mxu0 0
    %692 = vmatpush2.bf16.msra.mxu0 0
    %693 = vmatprep.subr.bf16.mxu0 0
    %694 = vmatpush2.bf16.msra.mxu0 0
    %695 = vmatprep.subr.bf16.mxu0 0
    %696 = vmatpush2.bf16.msra.mxu0 0
    %697 = vmatprep.mubr.bf16.mxu0 0
    %698 = vmatmul.mubr.bf16.gmra.mxu0 %v623
    %v699 = vpop.f32.mrf.mxu0
    %v700 = vadd.f32 0.0, %v699
    %v701 = vpop.f32.mrf.mxu0
    %v702 = vadd.f32 0.0, %v701
    %v703 = vpop.f32.mrf.mxu0
    %v704 = vpop.f32.mrf.mxu0
    %705 = vdwg.mxu0
    %v706 = vadd.f32 %v619, %v659
    %v707 = vadd.f32 %v620, %v661
    %v708 = vadd.f32 %v621, %v700
    %v709 = vadd.f32 %v622, %v702
    %v710 = vxor.u32 %v706, 2147483648
    %v711 = vmul.f32 %v710, 1.442695
    %v712 = vpow.pop %v711
    %v713 = vadd.f32 %v712, 1.0
    %v714 = vrcp.pop %v713
    %v715 = vmul.f32 1.0, %v714
    %v716 = vxor.u32 %v707, 2147483648
    %v717 = vmul.f32 %v716, 1.442695
    %v718 = vpow.pop %v717
    %v719 = vadd.f32 %v718, 1.0
    %v720 = vrcp.pop %v719
    %v721 = vmul.f32 1.0, %v720
    %v722 = vtanh.pop %v708
    %v723 = vxor.u32 %v709, 2147483648
    %v724 = vmul.f32 %v723, 1.442695
    %v725 = vpow.pop %v724
    %v726 = vadd.f32 %v725, 1.0
    %v727 = vrcp.pop %v726
    %v728 = vmul.f32 1.0, %v727
    %v729 = vmul.f32 %v721, %v617
    %v730 = vmul.f32 %v715, %v722
    %v731 = vadd.f32 %v729, %v730
    %v732 = vtanh.pop %v731
    %v733 = vmul.f32 %v728, %v732
    %s734 = sadd.s32 %s56, 3
    %p735 = scmp.lt.s32.totalorder %s734, %s55
    %s736 = scalar_select %p735, 1, 0
    %v737 = vstv %s736
    %vm738 = vcmp.eq.s32.totalorder %v737, 1
    %v739 = vsel %vm738, %v733, %v616
    %v740 = vsel %vm738, %v731, %v617
    %s741 = scalar_lea.vmem [#allocation7], 128
    %v742 = vld [vmem:[%s741] sm:$0xff]
    %v743 = vld [vmem:[%s741 + $0x8] sm:$0xff]
    %v744 = vld [vmem:[%s741 + $0x10] sm:$0xff]
    %v745 = vld [vmem:[%s741 + $0x18] sm:$0xff]
    %v746 = vpack.c.bf16 %v739, %v739
    %747 = vmatprep.subr.bf16.mxu0 %v221
    %748 = vmatpush1.bf16.msra.mxu0 %v220
    %749 = vmatprep.subr.bf16.mxu0 %v217
    %750 = vmatpush1.bf16.msra.mxu0 %v216
    %751 = vmatprep.subr.bf16.mxu0 %v213
    %752 = vmatpush1.bf16.msra.mxu0 %v212
    %753 = vmatprep.subr.bf16.mxu0 %v209
    %754 = vmatpush1.bf16.msra.mxu0 %v208
    %755 = vmatprep.subr.bf16.mxu0 %v205
    %756 = vmatpush1.bf16.msra.mxu0 %v204
    %757 = vmatprep.subr.bf16.mxu0 %v201
    %758 = vmatpush1.bf16.msra.mxu0 %v200
    %759 = vmatprep.subr.bf16.mxu0 %v197
    %760 = vmatpush1.bf16.msra.mxu0 %v196
    %761 = vmatprep.subr.bf16.mxu0 %v193
    %762 = vmatpush1.bf16.msra.mxu0 %v192
    %763 = vmatprep.subr.bf16.mxu0 0
    %764 = vmatpush2.bf16.msra.mxu0 0
    %765 = vmatprep.subr.bf16.mxu0 0
    %766 = vmatpush2.bf16.msra.mxu0 0
    %767 = vmatprep.subr.bf16.mxu0 0
    %768 = vmatpush2.bf16.msra.mxu0 0
    %769 = vmatprep.subr.bf16.mxu0 0
    %770 = vmatpush2.bf16.msra.mxu0 0
    %771 = vmatprep.subr.bf16.mxu0 0
    %772 = vmatpush2.bf16.msra.mxu0 0
    %773 = vmatprep.subr.bf16.mxu0 0
    %774 = vmatpush2.bf16.msra.mxu0 0
    %775 = vmatprep.subr.bf16.mxu0 0
    %776 = vmatpush2.bf16.msra.mxu0 0
    %777 = vmatprep.subr.bf16.mxu0 0
    %778 = vmatpush2.bf16.msra.mxu0 0
    %779 = vmatprep.mubr.bf16.mxu0 0
    %780 = vmatmul.mubr.bf16.gmra.mxu0 %v746
    %v781 = vpop.f32.mrf.mxu0
    %v782 = vadd.f32 0.0, %v781
    %v783 = vpop.f32.mrf.mxu0
    %v784 = vadd.f32 0.0, %v783
    %v785 = vpop.f32.mrf.mxu0
    %v786 = vpop.f32.mrf.mxu0
    %787 = vdwg.mxu0
    %788 = vmatprep.subr.bf16.mxu0 %v223
    %789 = vmatpush1.bf16.msra.mxu0 %v222
    %790 = vmatprep.subr.bf16.mxu0 %v219
    %791 = vmatpush1.bf16.msra.mxu0 %v218
    %792 = vmatprep.subr.bf16.mxu0 %v215
    %793 = vmatpush1.bf16.msra.mxu0 %v214
    %794 = vmatprep.subr.bf16.mxu0 %v211
    %795 = vmatpush1.bf16.msra.mxu0 %v210
    %796 = vmatprep.subr.bf16.mxu0 %v207
    %797 = vmatpush1.bf16.msra.mxu0 %v206
    %798 = vmatprep.subr.bf16.mxu0 %v203
    %799 = vmatpush1.bf16.msra.mxu0 %v202
    %800 = vmatprep.subr.bf16.mxu0 %v199
    %801 = vmatpush1.bf16.msra.mxu0 %v198
    %802 = vmatprep.subr.bf16.mxu0 %v195
    %803 = vmatpush1.bf16.msra.mxu0 %v194
    %804 = vmatprep.subr.bf16.mxu0 0
    %805 = vmatpush2.bf16.msra.mxu0 0
    %806 = vmatprep.subr.bf16.mxu0 0
    %807 = vmatpush2.bf16.msra.mxu0 0
    %808 = vmatprep.subr.bf16.mxu0 0
    %809 = vmatpush2.bf16.msra.mxu0 0
    %810 = vmatprep.subr.bf16.mxu0 0
    %811 = vmatpush2.bf16.msra.mxu0 0
    %812 = vmatprep.subr.bf16.mxu0 0
    %813 = vmatpush2.bf16.msra.mxu0 0
    %814 = vmatprep.subr.bf16.mxu0 0
    %815 = vmatpush2.bf16.msra.mxu0 0
    %816 = vmatprep.subr.bf16.mxu0 0
    %817 = vmatpush2.bf16.msra.mxu0 0
    %818 = vmatprep.subr.bf16.mxu0 0
    %819 = vmatpush2.bf16.msra.mxu0 0
    %820 = vmatprep.mubr.bf16.mxu0 0
    %821 = vmatmul.mubr.bf16.gmra.mxu0 %v746
    %v822 = vpop.f32.mrf.mxu0
    %v823 = vadd.f32 0.0, %v822
    %v824 = vpop.f32.mrf.mxu0
    %v825 = vadd.f32 0.0, %v824
    %v826 = vpop.f32.mrf.mxu0
    %v827 = vpop.f32.mrf.mxu0
    %828 = vdwg.mxu0
    %v829 = vadd.f32 %v742, %v782
    %v830 = vadd.f32 %v743, %v784
    %v831 = vadd.f32 %v744, %v823
    %v832 = vadd.f32 %v745, %v825
    %v833 = vxor.u32 %v829, 2147483648
    %v834 = vmul.f32 %v833, 1.442695
    %v835 = vpow.pop %v834
    %v836 = vadd.f32 %v835, 1.0
    %v837 = vrcp.pop %v836
    %v838 = vmul.f32 1.0, %v837
    %v839 = vxor.u32 %v830, 2147483648
    %v840 = vmul.f32 %v839, 1.442695
    %v841 = vpow.pop %v840
    %v842 = vadd.f32 %v841, 1.0
    %v843 = vrcp.pop %v842
    %v844 = vmul.f32 1.0, %v843
    %v845 = vtanh.pop %v831
    %v846 = vxor.u32 %v832, 2147483648
    %v847 = vmul.f32 %v846, 1.442695
    %v848 = vpow.pop %v847
    %v849 = vadd.f32 %v848, 1.0
    %v850 = vrcp.pop %v849
    %v851 = vmul.f32 1.0, %v850
    %v852 = vmul.f32 %v844, %v740
    %v853 = vmul.f32 %v838, %v845
    %v854 = vadd.f32 %v852, %v853
    %v855 = vtanh.pop %v854
    %v856 = vmul.f32 %v851, %v855
    %s857 = sadd.s32 %s56, 4
    %p858 = scmp.lt.s32.totalorder %s857, %s55
    %s859 = scalar_select %p858, 1, 0
    %v860 = vstv %s859
    %vm861 = vcmp.eq.s32.totalorder %v860, 1
    %v862 = vsel %vm861, %v856, %v739
    %v863 = vsel %vm861, %v854, %v740
    %s864 = scalar_lea.vmem [#allocation7], 160
    %v865 = vld [vmem:[%s864] sm:$0xff]
    %v866 = vld [vmem:[%s864 + $0x8] sm:$0xff]
    %v867 = vld [vmem:[%s864 + $0x10] sm:$0xff]
    %v868 = vld [vmem:[%s864 + $0x18] sm:$0xff]
    %v869 = vpack.c.bf16 %v862, %v862
    %870 = vmatprep.subr.bf16.mxu0 %v221
    %871 = vmatpush1.bf16.msra.mxu0 %v220
    %872 = vmatprep.subr.bf16.mxu0 %v217
    %873 = vmatpush1.bf16.msra.mxu0 %v216
    %874 = vmatprep.subr.bf16.mxu0 %v213
    %875 = vmatpush1.bf16.msra.mxu0 %v212
    %876 = vmatprep.subr.bf16.mxu0 %v209
    %877 = vmatpush1.bf16.msra.mxu0 %v208
    %878 = vmatprep.subr.bf16.mxu0 %v205
    %879 = vmatpush1.bf16.msra.mxu0 %v204
    %880 = vmatprep.subr.bf16.mxu0 %v201
    %881 = vmatpush1.bf16.msra.mxu0 %v200
    %882 = vmatprep.subr.bf16.mxu0 %v197
    %883 = vmatpush1.bf16.msra.mxu0 %v196
    %884 = vmatprep.subr.bf16.mxu0 %v193
    %885 = vmatpush1.bf16.msra.mxu0 %v192
    %886 = vmatprep.subr.bf16.mxu0 0
    %887 = vmatpush2.bf16.msra.mxu0 0
    %888 = vmatprep.subr.bf16.mxu0 0
    %889 = vmatpush2.bf16.msra.mxu0 0
    %890 = vmatprep.subr.bf16.mxu0 0
    %891 = vmatpush2.bf16.msra.mxu0 0
    %892 = vmatprep.subr.bf16.mxu0 0
    %893 = vmatpush2.bf16.msra.mxu0 0
    %894 = vmatprep.subr.bf16.mxu0 0
    %895 = vmatpush2.bf16.msra.mxu0 0
    %896 = vmatprep.subr.bf16.mxu0 0
    %897 = vmatpush2.bf16.msra.mxu0 0
    %898 = vmatprep.subr.bf16.mxu0 0
    %899 = vmatpush2.bf16.msra.mxu0 0
    %900 = vmatprep.subr.bf16.mxu0 0
    %901 = vmatpush2.bf16.msra.mxu0 0
    %902 = vmatprep.mubr.bf16.mxu0 0
    %903 = vmatmul.mubr.bf16.gmra.mxu0 %v869
    %v904 = vpop.f32.mrf.mxu0
    %v905 = vadd.f32 0.0, %v904
    %v906 = vpop.f32.mrf.mxu0
    %v907 = vadd.f32 0.0, %v906
    %v908 = vpop.f32.mrf.mxu0
    %v909 = vpop.f32.mrf.mxu0
    %910 = vdwg.mxu0
    %911 = vmatprep.subr.bf16.mxu0 %v223
    %912 = vmatpush1.bf16.msra.mxu0 %v222
    %913 = vmatprep.subr.bf16.mxu0 %v219
    %914 = vmatpush1.bf16.msra.mxu0 %v218
    %915 = vmatprep.subr.bf16.mxu0 %v215
    %916 = vmatpush1.bf16.msra.mxu0 %v214
    %917 = vmatprep.subr.bf16.mxu0 %v211
    %918 = vmatpush1.bf16.msra.mxu0 %v210
    %919 = vmatprep.subr.bf16.mxu0 %v207
    %920 = vmatpush1.bf16.msra.mxu0 %v206
    %921 = vmatprep.subr.bf16.mxu0 %v203
    %922 = vmatpush1.bf16.msra.mxu0 %v202
    %923 = vmatprep.subr.bf16.mxu0 %v199
    %924 = vmatpush1.bf16.msra.mxu0 %v198
    %925 = vmatprep.subr.bf16.mxu0 %v195
    %926 = vmatpush1.bf16.msra.mxu0 %v194
    %927 = vmatprep.subr.bf16.mxu0 0
    %928 = vmatpush2.bf16.msra.mxu0 0
    %929 = vmatprep.subr.bf16.mxu0 0
    %930 = vmatpush2.bf16.msra.mxu0 0
    %931 = vmatprep.subr.bf16.mxu0 0
    %932 = vmatpush2.bf16.msra.mxu0 0
    %933 = vmatprep.subr.bf16.mxu0 0
    %934 = vmatpush2.bf16.msra.mxu0 0
    %935 = vmatprep.subr.bf16.mxu0 0
    %936 = vmatpush2.bf16.msra.mxu0 0
    %937 = vmatprep.subr.bf16.mxu0 0
    %938 = vmatpush2.bf16.msra.mxu0 0
    %939 = vmatprep.subr.bf16.mxu0 0
    %940 = vmatpush2.bf16.msra.mxu0 0
    %941 = vmatprep.subr.bf16.mxu0 0
    %942 = vmatpush2.bf16.msra.mxu0 0
    %943 = vmatprep.mubr.bf16.mxu0 0
    %944 = vmatmul.mubr.bf16.gmra.mxu0 %v869
    %v945 = vpop.f32.mrf.mxu0
    %v946 = vadd.f32 0.0, %v945
    %v947 = vpop.f32.mrf.mxu0
    %v948 = vadd.f32 0.0, %v947
    %v949 = vpop.f32.mrf.mxu0
    %v950 = vpop.f32.mrf.mxu0
    %951 = vdwg.mxu0
    %v952 = vadd.f32 %v865, %v905
    %v953 = vadd.f32 %v866, %v907
    %v954 = vadd.f32 %v867, %v946
    %v955 = vadd.f32 %v868, %v948
    %v956 = vxor.u32 %v952, 2147483648
    %v957 = vmul.f32 %v956, 1.442695
    %v958 = vpow.pop %v957
    %v959 = vadd.f32 %v958, 1.0
    %v960 = vrcp.pop %v959
    %v961 = vmul.f32 1.0, %v960
    %v962 = vxor.u32 %v953, 2147483648
    %v963 = vmul.f32 %v962, 1.442695
    %v964 = vpow.pop %v963
    %v965 = vadd.f32 %v964, 1.0
    %v966 = vrcp.pop %v965
    %v967 = vmul.f32 1.0, %v966
    %v968 = vtanh.pop %v954
    %v969 = vxor.u32 %v955, 2147483648
    %v970 = vmul.f32 %v969, 1.442695
    %v971 = vpow.pop %v970
    %v972 = vadd.f32 %v971, 1.0
    %v973 = vrcp.pop %v972
    %v974 = vmul.f32 1.0, %v973
    %v975 = vmul.f32 %v967, %v863
    %v976 = vmul.f32 %v961, %v968
    %v977 = vadd.f32 %v975, %v976
    %v978 = vtanh.pop %v977
    %v979 = vmul.f32 %v974, %v978
    %s980 = sadd.s32 %s56, 5
    %p981 = scmp.lt.s32.totalorder %s980, %s55
    %s982 = scalar_select %p981, 1, 0
    %v983 = vstv %s982
    %vm984 = vcmp.eq.s32.totalorder %v983, 1
    %v985 = vsel %vm984, %v979, %v862
    %v986 = vsel %vm984, %v977, %v863
    %s987 = scalar_lea.vmem [#allocation7], 192
    %v988 = vld [vmem:[%s987] sm:$0xff]
    %v989 = vld [vmem:[%s987 + $0x8] sm:$0xff]
    %v990 = vld [vmem:[%s987 + $0x10] sm:$0xff]
    %v991 = vld [vmem:[%s987 + $0x18] sm:$0xff]
    %v992 = vpack.c.bf16 %v985, %v985
    %993 = vmatprep.subr.bf16.mxu0 %v221
    %994 = vmatpush1.bf16.msra.mxu0 %v220
    %995 = vmatprep.subr.bf16.mxu0 %v217
    %996 = vmatpush1.bf16.msra.mxu0 %v216
    %997 = vmatprep.subr.bf16.mxu0 %v213
    %998 = vmatpush1.bf16.msra.mxu0 %v212
    %999 = vmatprep.subr.bf16.mxu0 %v209
    %1000 = vmatpush1.bf16.msra.mxu0 %v208
    %1001 = vmatprep.subr.bf16.mxu0 %v205
    %1002 = vmatpush1.bf16.msra.mxu0 %v204
    %1003 = vmatprep.subr.bf16.mxu0 %v201
    %1004 = vmatpush1.bf16.msra.mxu0 %v200
    %1005 = vmatprep.subr.bf16.mxu0 %v197
    %1006 = vmatpush1.bf16.msra.mxu0 %v196
    %1007 = vmatprep.subr.bf16.mxu0 %v193
    %1008 = vmatpush1.bf16.msra.mxu0 %v192
    %1009 = vmatprep.subr.bf16.mxu0 0
    %1010 = vmatpush2.bf16.msra.mxu0 0
    %1011 = vmatprep.subr.bf16.mxu0 0
    %1012 = vmatpush2.bf16.msra.mxu0 0
    %1013 = vmatprep.subr.bf16.mxu0 0
    %1014 = vmatpush2.bf16.msra.mxu0 0
    %1015 = vmatprep.subr.bf16.mxu0 0
    %1016 = vmatpush2.bf16.msra.mxu0 0
    %1017 = vmatprep.subr.bf16.mxu0 0
    %1018 = vmatpush2.bf16.msra.mxu0 0
    %1019 = vmatprep.subr.bf16.mxu0 0
    %1020 = vmatpush2.bf16.msra.mxu0 0
    %1021 = vmatprep.subr.bf16.mxu0 0
    %1022 = vmatpush2.bf16.msra.mxu0 0
    %1023 = vmatprep.subr.bf16.mxu0 0
    %1024 = vmatpush2.bf16.msra.mxu0 0
    %1025 = vmatprep.mubr.bf16.mxu0 0
    %1026 = vmatmul.mubr.bf16.gmra.mxu0 %v992
    %v1027 = vpop.f32.mrf.mxu0
    %v1028 = vadd.f32 0.0, %v1027
    %v1029 = vpop.f32.mrf.mxu0
    %v1030 = vadd.f32 0.0, %v1029
    %v1031 = vpop.f32.mrf.mxu0
    %v1032 = vpop.f32.mrf.mxu0
    %1033 = vdwg.mxu0
    %1034 = vmatprep.subr.bf16.mxu0 %v223
    %1035 = vmatpush1.bf16.msra.mxu0 %v222
    %1036 = vmatprep.subr.bf16.mxu0 %v219
    %1037 = vmatpush1.bf16.msra.mxu0 %v218
    %1038 = vmatprep.subr.bf16.mxu0 %v215
    %1039 = vmatpush1.bf16.msra.mxu0 %v214
    %1040 = vmatprep.subr.bf16.mxu0 %v211
    %1041 = vmatpush1.bf16.msra.mxu0 %v210
    %1042 = vmatprep.subr.bf16.mxu0 %v207
    %1043 = vmatpush1.bf16.msra.mxu0 %v206
    %1044 = vmatprep.subr.bf16.mxu0 %v203
    %1045 = vmatpush1.bf16.msra.mxu0 %v202
    %1046 = vmatprep.subr.bf16.mxu0 %v199
    %1047 = vmatpush1.bf16.msra.mxu0 %v198
    %1048 = vmatprep.subr.bf16.mxu0 %v195
    %1049 = vmatpush1.bf16.msra.mxu0 %v194
    %1050 = vmatprep.subr.bf16.mxu0 0
    %1051 = vmatpush2.bf16.msra.mxu0 0
    %1052 = vmatprep.subr.bf16.mxu0 0
    %1053 = vmatpush2.bf16.msra.mxu0 0
    %1054 = vmatprep.subr.bf16.mxu0 0
    %1055 = vmatpush2.bf16.msra.mxu0 0
    %1056 = vmatprep.subr.bf16.mxu0 0
    %1057 = vmatpush2.bf16.msra.mxu0 0
    %1058 = vmatprep.subr.bf16.mxu0 0
    %1059 = vmatpush2.bf16.msra.mxu0 0
    %1060 = vmatprep.subr.bf16.mxu0 0
    %1061 = vmatpush2.bf16.msra.mxu0 0
    %1062 = vmatprep.subr.bf16.mxu0 0
    %1063 = vmatpush2.bf16.msra.mxu0 0
    %1064 = vmatprep.subr.bf16.mxu0 0
    %1065 = vmatpush2.bf16.msra.mxu0 0
    %1066 = vmatprep.mubr.bf16.mxu0 0
    %1067 = vmatmul.mubr.bf16.gmra.mxu0 %v992
    %v1068 = vpop.f32.mrf.mxu0
    %v1069 = vadd.f32 0.0, %v1068
    %v1070 = vpop.f32.mrf.mxu0
    %v1071 = vadd.f32 0.0, %v1070
    %v1072 = vpop.f32.mrf.mxu0
    %v1073 = vpop.f32.mrf.mxu0
    %1074 = vdwg.mxu0
    %v1075 = vadd.f32 %v988, %v1028
    %v1076 = vadd.f32 %v989, %v1030
    %v1077 = vadd.f32 %v990, %v1069
    %v1078 = vadd.f32 %v991, %v1071
    %v1079 = vxor.u32 %v1075, 2147483648
    %v1080 = vmul.f32 %v1079, 1.442695
    %v1081 = vpow.pop %v1080
    %v1082 = vadd.f32 %v1081, 1.0
    %v1083 = vrcp.pop %v1082
    %v1084 = vmul.f32 1.0, %v1083
    %v1085 = vxor.u32 %v1076, 2147483648
    %v1086 = vmul.f32 %v1085, 1.442695
    %v1087 = vpow.pop %v1086
    %v1088 = vadd.f32 %v1087, 1.0
    %v1089 = vrcp.pop %v1088
    %v1090 = vmul.f32 1.0, %v1089
    %v1091 = vtanh.pop %v1077
    %v1092 = vxor.u32 %v1078, 2147483648
    %v1093 = vmul.f32 %v1092, 1.442695
    %v1094 = vpow.pop %v1093
    %v1095 = vadd.f32 %v1094, 1.0
    %v1096 = vrcp.pop %v1095
    %v1097 = vmul.f32 1.0, %v1096
    %v1098 = vmul.f32 %v1090, %v986
    %v1099 = vmul.f32 %v1084, %v1091
    %v1100 = vadd.f32 %v1098, %v1099
    %v1101 = vtanh.pop %v1100
    %v1102 = vmul.f32 %v1097, %v1101
    %s1103 = sadd.s32 %s56, 6
    %p1104 = scmp.lt.s32.totalorder %s1103, %s55
    %s1105 = scalar_select %p1104, 1, 0
    %v1106 = vstv %s1105
    %vm1107 = vcmp.eq.s32.totalorder %v1106, 1
    %v1108 = vsel %vm1107, %v1102, %v985
    %v1109 = vsel %vm1107, %v1100, %v986
    %s1110 = scalar_lea.vmem [#allocation7], 224
    %v1111 = vld [vmem:[%s1110] sm:$0xff]
    %v1112 = vld [vmem:[%s1110 + $0x8] sm:$0xff]
    %v1113 = vld [vmem:[%s1110 + $0x10] sm:$0xff]
    %v1114 = vld [vmem:[%s1110 + $0x18] sm:$0xff]
    %v1115 = vpack.c.bf16 %v1108, %v1108
    %1116 = vmatprep.subr.bf16.mxu0 %v221
    %1117 = vmatpush1.bf16.msra.mxu0 %v220
    %1118 = vmatprep.subr.bf16.mxu0 %v217
    %1119 = vmatpush1.bf16.msra.mxu0 %v216
    %1120 = vmatprep.subr.bf16.mxu0 %v213
    %1121 = vmatpush1.bf16.msra.mxu0 %v212
    %1122 = vmatprep.subr.bf16.mxu0 %v209
    %1123 = vmatpush1.bf16.msra.mxu0 %v208
    %1124 = vmatprep.subr.bf16.mxu0 %v205
    %1125 = vmatpush1.bf16.msra.mxu0 %v204
    %1126 = vmatprep.subr.bf16.mxu0 %v201
    %1127 = vmatpush1.bf16.msra.mxu0 %v200
    %1128 = vmatprep.subr.bf16.mxu0 %v197
    %1129 = vmatpush1.bf16.msra.mxu0 %v196
    %1130 = vmatprep.subr.bf16.mxu0 %v193
    %1131 = vmatpush1.bf16.msra.mxu0 %v192
    %1132 = vmatprep.subr.bf16.mxu0 0
    %1133 = vmatpush2.bf16.msra.mxu0 0
    %1134 = vmatprep.subr.bf16.mxu0 0
    %1135 = vmatpush2.bf16.msra.mxu0 0
    %1136 = vmatprep.subr.bf16.mxu0 0
    %1137 = vmatpush2.bf16.msra.mxu0 0
    %1138 = vmatprep.subr.bf16.mxu0 0
    %1139 = vmatpush2.bf16.msra.mxu0 0
    %1140 = vmatprep.subr.bf16.mxu0 0
    %1141 = vmatpush2.bf16.msra.mxu0 0
    %1142 = vmatprep.subr.bf16.mxu0 0
    %1143 = vmatpush2.bf16.msra.mxu0 0
    %1144 = vmatprep.subr.bf16.mxu0 0
    %1145 = vmatpush2.bf16.msra.mxu0 0
    %1146 = vmatprep.subr.bf16.mxu0 0
    %1147 = vmatpush2.bf16.msra.mxu0 0
    %1148 = vmatprep.mubr.bf16.mxu0 0
    %1149 = vmatmul.mubr.bf16.gmra.mxu0 %v1115
    %v1150 = vpop.f32.mrf.mxu0
    %v1151 = vadd.f32 0.0, %v1150
    %v1152 = vpop.f32.mrf.mxu0
    %v1153 = vadd.f32 0.0, %v1152
    %v1154 = vpop.f32.mrf.mxu0
    %v1155 = vpop.f32.mrf.mxu0
    %1156 = vdwg.mxu0
    %1157 = vmatprep.subr.bf16.mxu0 %v223
    %1158 = vmatpush1.bf16.msra.mxu0 %v222
    %1159 = vmatprep.subr.bf16.mxu0 %v219
    %1160 = vmatpush1.bf16.msra.mxu0 %v218
    %1161 = vmatprep.subr.bf16.mxu0 %v215
    %1162 = vmatpush1.bf16.msra.mxu0 %v214
    %1163 = vmatprep.subr.bf16.mxu0 %v211
    %1164 = vmatpush1.bf16.msra.mxu0 %v210
    %1165 = vmatprep.subr.bf16.mxu0 %v207
    %1166 = vmatpush1.bf16.msra.mxu0 %v206
    %1167 = vmatprep.subr.bf16.mxu0 %v203
    %1168 = vmatpush1.bf16.msra.mxu0 %v202
    %1169 = vmatprep.subr.bf16.mxu0 %v199
    %1170 = vmatpush1.bf16.msra.mxu0 %v198
    %1171 = vmatprep.subr.bf16.mxu0 %v195
    %1172 = vmatpush1.bf16.msra.mxu0 %v194
    %1173 = vmatprep.subr.bf16.mxu0 0
    %1174 = vmatpush2.bf16.msra.mxu0 0
    %1175 = vmatprep.subr.bf16.mxu0 0
    %1176 = vmatpush2.bf16.msra.mxu0 0
    %1177 = vmatprep.subr.bf16.mxu0 0
    %1178 = vmatpush2.bf16.msra.mxu0 0
    %1179 = vmatprep.subr.bf16.mxu0 0
    %1180 = vmatpush2.bf16.msra.mxu0 0
    %1181 = vmatprep.subr.bf16.mxu0 0
    %1182 = vmatpush2.bf16.msra.mxu0 0
    %1183 = vmatprep.subr.bf16.mxu0 0
    %1184 = vmatpush2.bf16.msra.mxu0 0
    %1185 = vmatprep.subr.bf16.mxu0 0
    %1186 = vmatpush2.bf16.msra.mxu0 0
    %1187 = vmatprep.subr.bf16.mxu0 0
    %1188 = vmatpush2.bf16.msra.mxu0 0
    %1189 = vmatprep.mubr.bf16.mxu0 0
    %1190 = vmatmul.mubr.bf16.gmra.mxu0 %v1115
    %v1191 = vpop.f32.mrf.mxu0
    %v1192 = vadd.f32 0.0, %v1191
    %v1193 = vpop.f32.mrf.mxu0
    %v1194 = vadd.f32 0.0, %v1193
    %v1195 = vpop.f32.mrf.mxu0
    %v1196 = vpop.f32.mrf.mxu0
    %1197 = vdwg.mxu0
    %v1198 = vadd.f32 %v1111, %v1151
    %v1199 = vadd.f32 %v1112, %v1153
    %v1200 = vadd.f32 %v1113, %v1192
    %v1201 = vadd.f32 %v1114, %v1194
    %v1202 = vxor.u32 %v1198, 2147483648
    %v1203 = vmul.f32 %v1202, 1.442695
    %v1204 = vpow.pop %v1203
    %v1205 = vadd.f32 %v1204, 1.0
    %v1206 = vrcp.pop %v1205
    %v1207 = vmul.f32 1.0, %v1206
    %v1208 = vxor.u32 %v1199, 2147483648
    %v1209 = vmul.f32 %v1208, 1.442695
    %v1210 = vpow.pop %v1209
    %v1211 = vadd.f32 %v1210, 1.0
    %v1212 = vrcp.pop %v1211
    %v1213 = vmul.f32 1.0, %v1212
    %v1214 = vtanh.pop %v1200
    %v1215 = vxor.u32 %v1201, 2147483648
    %v1216 = vmul.f32 %v1215, 1.442695
    %v1217 = vpow.pop %v1216
    %v1218 = vadd.f32 %v1217, 1.0
    %v1219 = vrcp.pop %v1218
    %v1220 = vmul.f32 1.0, %v1219
    %v1221 = vmul.f32 %v1213, %v1109
    %v1222 = vmul.f32 %v1207, %v1214
    %v1223 = vadd.f32 %v1221, %v1222
    %v1224 = vtanh.pop %v1223
    %v1225 = vmul.f32 %v1220, %v1224
    %s1226 = sadd.s32 %s56, 7
    %p1227 = scmp.lt.s32.totalorder %s1226, %s55
    %s1228 = scalar_select %p1227, 1, 0
    %v1229 = vstv %s1228
    %vm1230 = vcmp.eq.s32.totalorder %v1229, 1
    %v1231 = vsel %vm1230, %v1225, %v1108
    %v1232 = vsel %vm1230, %v1223, %v1109
    %1233 = vst [vmem:[#allocation2] sm:$0xff] %v1231
    %1234 = vst [vmem:[#allocation3] sm:$0xff] %v1232
    // Predicated region
    $region30: #{tpu_custom_call.1} parent=1 // pred_check
      %p1235 = pneg %p49
    $region31: #{tpu_custom_call.1} parent=1 // pred_check_branch
      %1237 = sbr.rel (%p1235) target = $region33
    $region32: #{tpu_custom_call.1} parent=1 // pred_region
      %v1238 = vld [vmem:[%s3] sm:$0x1]
      %v1240 = vlaneseq
      %v1241 = vshrl.u32 %v1240, 7
      %v1242 = vsub.s32 0, %v1241
      %v1243 = vrot.slane %v1238, %v1242
      %v1245 = vmul.f32 %v1231, %v1243
      %1246 = vadd.xlane.f32.xlu0 %v1245
      %v1247 = vpop.xlane.xlu0 %1246
      %s1248 = sld [smem:[#allocation6]]
      %v1249 = vstv %s1248
      %v1250 = vadd.f32 %v1247, %v1249
      %v1251 = vxor.u32 %v1250, 2147483648
      %v1252 = vmul.f32 %v1251, 1.442695
      %v1253 = vpow.pop %v1252
      %v1254 = vadd.f32 %v1253, 1.0
      %v1255 = vrcp.pop %v1254
      %v1256 = vmul.f32 1.0, %v1255
      %vm1257 = vcmask 7168
      %1258 = vst.msk [vmem:[%s5] sm:$0xff] %vm1257, %v1256
    $region33: #{tpu_custom_call.1} parent=1 // pred_fallthru
      _
    // Predicated region
    $region34: #{tpu_custom_call.1} parent=1 // pred_check
      _
    $region35: #{tpu_custom_call.1} parent=1 // pred_check_branch
      %1260 = sbr.rel (0) target = $region37
    $region36: #{tpu_custom_call.1} parent=1 // pred_region
      _
    $region37: #{tpu_custom_call.1} parent=1 // pred_fallthru
      _
    // Predicated region
    $region38: #{tpu_custom_call.1} parent=1 // pred_check
      _
    $region39: #{tpu_custom_call.1} parent=1 // pred_check_branch
      %1262 = sbr.rel (0) target = $region41
    $region40: #{tpu_custom_call.1} parent=1 // pred_region
      _
    $region41: #{tpu_custom_call.1} parent=1 // pred_fallthru
      _
    %1263 = vsyncpa [#allocation8], 1
    %1264 = vsyncpa [#allocation10], 1

</llo_original>
